<compile_context>
chip_gen: v7x
topology: tpu7x:2x2x1
jax: 0.10.0
libtpu: 0.0.40
codegen_flags: <defaults>
</compile_context>

<pallas_src>
import functools
import math

import jax
import jax.numpy as jnp
from jax.experimental import pallas as pl
from jax.experimental.pallas import tpu as pltpu


def _round_up(n, m):
    return ((n + m - 1) // m) * m


# ------------------------------ fused forward kernel ---------------------------------
def _fused_forward_kernel(D, H, S, B, Bp, C, n_layers, w_sl, b_sl,
                          classification, use_bf16,
                          xv_ref, w_ref, b_ref, o_ref, hall_ref):
    """Whole DGaussianModel forward in one program.

    xv_ref  : (S*Bp, D+1)  time-major rows ordered (t, b); column D is the N(0,1) sample v.
    w_ref   : packed weights (rows 8-padded): [MLP W_l ..., W_ih, W_hh, W_ms, mix_weight.T]
    b_ref   : packed biases, each block lane-padded to 128: [b_l ..., b_ih, b_hh, b_ms]
    hall_ref: (S*Bp, H) VMEM scratch stashing all GRU hidden states so the Gaussian head
              and class mixing run as one batched block after the recurrence.
    """
    f32 = jnp.float32
    cdt = jnp.bfloat16 if use_bf16 else f32

    def mm(a, b):
        # Used only for the big hoisted (non-recurrent) matmuls; f32 accumulation.
        return jnp.dot(a.astype(cdt), b.astype(cdt), preferred_element_type=f32)

    x = xv_ref[:, 0:D]                                    # (S*Bp, D)

    # ---- MLP encoder on all (timestep, batch) rows at once; dropout == identity ----
    for l in range(n_layers):
        ro, rn, cn = w_sl[l]
        co, _ = b_sl[l]
        x = jnp.maximum(mm(x, w_ref[ro:ro + rn, 0:cn]) + b_ref[0:1, co:co + cn], 0.0)

    # ---- hoisted GRU input projection for ALL timesteps: one big matmul ----
    ro, rn, cn = w_sl[n_layers]                           # W_ih  (H, 3H), cols [r | z | n]
    co, _ = b_sl[n_layers]
    gi = mm(x, w_ref[ro:ro + rn, 0:cn]) + b_ref[0:1, co:co + cn]    # (S*Bp, 3H)

    # Recurrent weights loaded once (and kept in f32) OUTSIDE the unrolled loop.
    ro, rn, cn = w_sl[n_layers + 1]                       # W_hh  (H, 3H)
    co, _ = b_sl[n_layers + 1]
    whh = w_ref[ro:ro + rn, 0:cn]
    bhh = b_ref[0:1, co:co + cn]

    # ---- sequential GRU recurrence: only h @ W_hh remains on the serial path ----
    h = jnp.zeros((Bp, H), f32)
    for t in range(S):                                    # statically unrolled (S small/fixed)
        r0 = t * Bp                                       # multiple of 8 -> sublane aligned
        gi_t = gi[r0:r0 + Bp, :]
        gh_t = jnp.dot(h, whh, preferred_element_type=f32) + bhh
        r = jax.nn.sigmoid(gi_t[:, 0:H] + gh_t[:, 0:H])
        z = jax.nn.sigmoid(gi_t[:, H:2 * H] + gh_t[:, H:2 * H])
        n = jnp.tanh(gi_t[:, 2 * H:3 * H] + r * gh_t[:, 2 * H:3 * H])
        h = (1.0 - z) * n + z * h                         # == obs_embedding[:, t, :]
        hall_ref[r0:r0 + Bp, :] = h                       # stash; head deferred to after loop

    # ---- deferred Gaussian head (mean/std), reparameterization, class mixing --------
    ro, rn, cn = w_sl[n_layers + 2]                       # W_ms (H, 2): cols [mean | std]
    co, _ = b_sl[n_layers + 2]
    wms = w_ref[ro:ro + rn, 0:cn]
    bms = b_ref[0:1, co:co + cn]
    ro, rn, cn = w_sl[n_layers + 3]                       # mix_weight.T (S, C)
    mwt = w_ref[ro:ro + rn, 0:cn]

    v = xv_ref[:, D:D + 1]                                # (S*Bp, 1) standard-normal sample
    h_all = hall_ref[...]                                 # (S*Bp, H)
    ms = mm(h_all, wms) + bms                             # (S*Bp, 2)
    f = ms[:, 0:1] + v * ms[:, 1:2]                       # f ~ N(mean, std^2)

    out = jnp.zeros((Bp, C), f32)
    for t in range(S):                                    # out = f @ mix_weight.T (accumulated)
        out = out + f[t * Bp:(t + 1) * Bp, :] * mwt[t:t + 1, :]

    if classification:
        out = out - jnp.max(out, axis=-1, keepdims=True)
        e = jnp.exp(out)
        out = e / jnp.sum(e, axis=-1, keepdims=True)      # exact normalization

    o_ref[...] = out[0:B, :].astype(o_ref.dtype)


# ------------------------------------- wrapper ----------------------------------------
def dgaussian_forward(params, obs, v, likelihood_type="classification", use_bf16=False):
    B, S, D = obs.shape
    mlp = params["mlp"]
    n_layers = len(mlp)
    H = mlp[-1][0].shape[1]
    C = params["mix_weight"].shape[0]
    Bp = _round_up(max(B, 8), 8)                          # pad batch to the 8-sublane granule

    # --- one-time relayout: time-major (t, b) rows, batch padded, v packed as last col ---
    xt = jnp.transpose(obs, (1, 0, 2))                    # (S, B, D)
    vt = jnp.transpose(v, (1, 0))[:, :, None]             # (S, B, 1)
    if Bp != B:
        xt = jnp.pad(xt, ((0, 0), (0, Bp - B), (0, 0)))
        vt = jnp.pad(vt, ((0, 0), (0, Bp - B), (0, 0)))
    xv = jnp.concatenate([xt, vt], axis=-1).reshape(S * Bp, D + 1)

    # --- pack ALL weight matrices into one slab (rows 8-padded, cols padded to max width) ---
    w_blocks = [w for (w, _) in mlp] + [
        params["w_ih"], params["w_hh"], params["w_ms"],
        jnp.transpose(params["mix_weight"])]              # (S, C)
    wmax = max(wb.shape[1] for wb in w_blocks)
    w_slices, w_rows, roff = [], [], 0
    for wb in w_blocks:
        rn, cn = wb.shape
        rpad = _round_up(rn, 8)
        w_slices.append((roff, rn, cn))
        w_rows.append(jnp.pad(wb, ((0, rpad - rn), (0, wmax - cn))))
        roff += rpad
    w_pack = jnp.concatenate(w_rows, axis=0)

    # --- pack ALL biases into one row, each block lane-padded to 128 for aligned slices ---
    b_blocks = [b for (_, b) in mlp] + [params["b_ih"], params["b_hh"], params["b_ms"]]
    b_slices, b_cols, coff = [], [], 0
    for bb in b_blocks:
        cn = bb.shape[-1]
        cpad = _round_up(cn, 128)
        b_slices.append((coff, cn))
        b_cols.append(jnp.pad(bb.reshape(1, cn), ((0, 0), (0, cpad - cn))))
        coff += cpad
    b_pack = jnp.concatenate(b_cols, axis=1)

    kernel = functools.partial(
        _fused_forward_kernel, D, H, S, B, Bp, C, n_layers,
        tuple(w_slices), tuple(b_slices),
        likelihood_type == "classification", use_bf16)

    return pl.pallas_call(
        kernel,
        out_shape=jax.ShapeDtypeStruct((B, C), jnp.float32),
        grid=(1,),
        in_specs=[pl.BlockSpec(xv.shape, lambda i: (0, 0)),
                  pl.BlockSpec(w_pack.shape, lambda i: (0, 0)),
                  pl.BlockSpec(b_pack.shape, lambda i: (0, 0))],
        out_specs=pl.BlockSpec((B, C), lambda i: (0, 0)),
        scratch_shapes=[pltpu.VMEM((S * Bp, H), jnp.float32)],
        compiler_params=pltpu.CompilerParams(dimension_semantics=("arbitrary",)),
    )(xv, w_pack, b_pack)


# ------------------------------- parameter construction -------------------------------
def init_params(key, seq_len, input_dim, hiddens, num_class):
    ks = iter(jax.random.split(key, 2 * len(hiddens) + 8))
    params = {}

    mlp = []
    prev = input_dim
    for h in hiddens:
        bound = 1.0 / math.sqrt(prev)
        w = jax.random.uniform(next(ks), (prev, h), jnp.float32, -bound, bound)
        b = jax.random.uniform(next(ks), (1, h), jnp.float32, -bound, bound)
        mlp.append((w, b))
        prev = h
    params["mlp"] = mlp

    H = hiddens[-1]
    bound = 1.0 / math.sqrt(H)
    # GRU weights: PyTorch layout transposed and gate-concatenated, columns = [r | z | n].
    params["w_ih"] = jax.random.uniform(next(ks), (H, 3 * H), jnp.float32, -bound, bound)
    params["w_hh"] = jax.random.uniform(next(ks), (H, 3 * H), jnp.float32, -bound, bound)
    params["b_ih"] = jax.random.uniform(next(ks), (1, 3 * H), jnp.float32, -bound, bound)
    params["b_hh"] = jax.random.uniform(next(ks), (1, 3 * H), jnp.float32, -bound, bound)
    # f_mean_net / f_std_net (Linear(H,1) each) stacked: columns = [mean | std].
    params["w_ms"] = jax.random.uniform(next(ks), (H, 2), jnp.float32, -bound, bound)
    params["b_ms"] = jax.random.uniform(next(ks), (1, 2), jnp.float32, -bound, bound)
    # mix_weight = torch.randn(num_class, seq_len)
    params["mix_weight"] = jax.random.normal(next(ks), (num_class, seq_len), jnp.float32)
    return params


# ------------------------------- pure-JAX reference -----------------------------------
def _reference_forward(params, obs, v, likelihood_type="classification"):
    B, S, D = obs.shape
    H = params["w_hh"].shape[0]
    x = obs.reshape(B * S, D)
    for (w, b) in params["mlp"]:
        x = jnp.maximum(x @ w + b, 0.0)
    x = x.reshape(B, S, H)
    h = jnp.zeros((B, H), jnp.float32)
    embs = []
    for t in range(S):
        gi = x[:, t, :] @ params["w_ih"] + params["b_ih"]
        gh = h @ params["w_hh"] + params["b_hh"]
        r = jax.nn.sigmoid(gi[:, :H] + gh[:, :H])
        z = jax.nn.sigmoid(gi[:, H:2 * H] + gh[:, H:2 * H])
        n = jnp.tanh(gi[:, 2 * H:] + r * gh[:, 2 * H:])
        h = (1.0 - z) * n + z * h
        embs.append(h)
    emb = jnp.stack(embs, axis=1)                         # (B, S, H)
    ms = emb @ params["w_ms"] + params["b_ms"]            # (B, S, 2)
    f = ms[..., 0] + v * ms[..., 1]                       # (B, S)
    out = f @ params["mix_weight"].T                      # (B, C)
    if likelihood_type == "classification":
        out = jax.nn.softmax(out, axis=-1)
    return out


if __name__ == "__main__":
    B, S, D = 2, 8, 16          # batch, seq_len, input_dim
    hiddens = [32, 32]
    num_class = 4

    key = jax.random.PRNGKey(0)
    k_obs, k_v, k_par = jax.random.split(key, 3)

    obs = jax.random.normal(k_obs, (B, S, D), dtype=jnp.float32)
    # deterministic stand-in for torch.randn(mean.shape) in gaussian_transformation
    v = jax.random.normal(k_v, (B, S), dtype=jnp.float32)
    params = init_params(k_par, S, D, hiddens, num_class)

    fwd = jax.jit(functools.partial(dgaussian_forward, likelihood_type="classification"))
    pred = jax.block_until_ready(fwd(params, obs, v))

    assert pred.shape == (B, num_class)
    assert bool(jnp.all(jnp.isfinite(pred)))

    ref = _reference_forward(params, obs, v, "classification")
    assert bool(jnp.max(jnp.abs(pred - ref)) < 1e-3), (pred, ref)

    print("KERNEL_OK")
</pallas_src>

<mosaic_0001>
module attributes {stable_mosaic.version = 11 : i64} {
  func.func @_fused_forward_kernel(%arg0: i32, %arg1: memref<64x17xf32, #tpu.memory_space<vmem>>, %arg2: memref<152x96xf32, #tpu.memory_space<vmem>>, %arg3: memref<1x640xf32, #tpu.memory_space<vmem>>, %arg4: memref<2x4xf32, #tpu.memory_space<vmem>>, %arg5: memref<64x32xf32, #tpu.memory_space<vmem>>) attributes {dimension_semantics = [#tpu.dimension_semantics<arbitrary>], iteration_bounds = array<i64: 1>, scalar_prefetch = 0 : i64, scratch_operands = 1 : i64, tpu.core_type = #tpu.core_type<tc>, window_params = [{pipeline_mode = #tpu.pipeline_mode<synchronous>, transform_indices = @transform_0, window_bounds = array<i64: 64, 17>}, {pipeline_mode = #tpu.pipeline_mode<synchronous>, transform_indices = @transform_1, window_bounds = array<i64: 152, 96>}, {pipeline_mode = #tpu.pipeline_mode<synchronous>, transform_indices = @transform_2, window_bounds = array<i64: 1, 640>}, {pipeline_mode = #tpu.pipeline_mode<synchronous>, transform_indices = @transform_3, window_bounds = array<i64: 2, 4>}]} {
    %c0 = arith.constant 0 : index
    %c0_0 = arith.constant 0 : index
    %0 = vector.load %arg1[%c0, %c0_0] : memref<64x17xf32, #tpu.memory_space<vmem>>, vector<64x16xf32>
    %c0_1 = arith.constant 0 : index
    %c0_2 = arith.constant 0 : index
    %1 = vector.load %arg2[%c0_1, %c0_2] : memref<152x96xf32, #tpu.memory_space<vmem>>, vector<16x32xf32>
    %cst = arith.constant dense<0.000000e+00> : vector<64x32xf32>
    %2 = tpu.matmul %0, %1, %cst {dimension_numbers = #tpu.dot_dimension_numbers<[1], [0], [0], [1], [0, 0, 1, 1], [], []>} : vector<64x16xf32>, vector<16x32xf32>, vector<64x32xf32> -> vector<64x32xf32>
    %c0_3 = arith.constant 0 : index
    %c0_4 = arith.constant 0 : index
    %3 = vector.load %arg3[%c0_3, %c0_4] : memref<1x640xf32, #tpu.memory_space<vmem>>, vector<1x32xf32>
    %4 = vector.broadcast %3 : vector<1x32xf32> to vector<64x32xf32>
    %5 = arith.addf %2, %4 : vector<64x32xf32>
    %cst_5 = arith.constant 0.000000e+00 : f32
    %6 = vector.broadcast %cst_5 : f32 to vector<64x32xf32>
    %7 = arith.maximumf %5, %6 : vector<64x32xf32>
    %c16 = arith.constant 16 : index
    %c0_6 = arith.constant 0 : index
    %8 = vector.load %arg2[%c16, %c0_6] : memref<152x96xf32, #tpu.memory_space<vmem>>, vector<32x32xf32>
    %cst_7 = arith.constant dense<0.000000e+00> : vector<64x32xf32>
    %9 = tpu.matmul %7, %8, %cst_7 {dimension_numbers = #tpu.dot_dimension_numbers<[1], [0], [0], [1], [0, 0, 1, 1], [], []>} : vector<64x32xf32>, vector<32x32xf32>, vector<64x32xf32> -> vector<64x32xf32>
    %c0_8 = arith.constant 0 : index
    %c128 = arith.constant 128 : index
    %10 = vector.load %arg3[%c0_8, %c128] : memref<1x640xf32, #tpu.memory_space<vmem>>, vector<1x32xf32>
    %11 = vector.broadcast %10 : vector<1x32xf32> to vector<64x32xf32>
    %12 = arith.addf %9, %11 : vector<64x32xf32>
    %cst_9 = arith.constant 0.000000e+00 : f32
    %13 = vector.broadcast %cst_9 : f32 to vector<64x32xf32>
    %14 = arith.maximumf %12, %13 : vector<64x32xf32>
    %c48 = arith.constant 48 : index
    %c0_10 = arith.constant 0 : index
    %15 = vector.load %arg2[%c48, %c0_10] : memref<152x96xf32, #tpu.memory_space<vmem>>, vector<32x96xf32>
    %cst_11 = arith.constant dense<0.000000e+00> : vector<64x96xf32>
    %16 = tpu.matmul %14, %15, %cst_11 {dimension_numbers = #tpu.dot_dimension_numbers<[1], [0], [0], [1], [0, 0, 1, 1], [], []>} : vector<64x32xf32>, vector<32x96xf32>, vector<64x96xf32> -> vector<64x96xf32>
    %c0_12 = arith.constant 0 : index
    %c256 = arith.constant 256 : index
    %17 = vector.load %arg3[%c0_12, %c256] : memref<1x640xf32, #tpu.memory_space<vmem>>, vector<1x96xf32>
    %18 = vector.broadcast %17 : vector<1x96xf32> to vector<64x96xf32>
    %19 = arith.addf %16, %18 : vector<64x96xf32>
    %c80 = arith.constant 80 : index
    %c0_13 = arith.constant 0 : index
    %20 = vector.load %arg2[%c80, %c0_13] : memref<152x96xf32, #tpu.memory_space<vmem>>, vector<32x96xf32>
    %c0_14 = arith.constant 0 : index
    %c384 = arith.constant 384 : index
    %21 = vector.load %arg3[%c0_14, %c384] : memref<1x640xf32, #tpu.memory_space<vmem>>, vector<1x96xf32>
    %cst_15 = arith.constant 0.000000e+00 : f32
    %22 = vector.broadcast %cst_15 : f32 to vector<8x32xf32>
    %23 = vector.extract_strided_slice %19 {offsets = [0, 0], sizes = [8, 96], strides = [1, 1]} : vector<64x96xf32> to vector<8x96xf32>
    %cst_16 = arith.constant dense<0.000000e+00> : vector<8x96xf32>
    %24 = tpu.matmul %22, %20, %cst_16 {dimension_numbers = #tpu.dot_dimension_numbers<[1], [0], [0], [1], [0, 0, 1, 1], [], []>} : vector<8x32xf32>, vector<32x96xf32>, vector<8x96xf32> -> vector<8x96xf32>
    %25 = vector.broadcast %21 : vector<1x96xf32> to vector<8x96xf32>
    %26 = arith.addf %24, %25 : vector<8x96xf32>
    %27 = vector.extract_strided_slice %23 {offsets = [0, 0], sizes = [8, 32], strides = [1, 1]} : vector<8x96xf32> to vector<8x32xf32>
    %28 = vector.extract_strided_slice %26 {offsets = [0, 0], sizes = [8, 32], strides = [1, 1]} : vector<8x96xf32> to vector<8x32xf32>
    %29 = arith.addf %27, %28 : vector<8x32xf32>
    %30 = arith.negf %29 : vector<8x32xf32>
    %31 = math.exp %30 : vector<8x32xf32>
    %cst_17 = arith.constant 1.000000e+00 : f32
    %32 = vector.broadcast %cst_17 : f32 to vector<8x32xf32>
    %33 = arith.addf %32, %31 : vector<8x32xf32>
    %34 = arith.divf %32, %33 : vector<8x32xf32>
    %35 = vector.extract_strided_slice %23 {offsets = [0, 32], sizes = [8, 32], strides = [1, 1]} : vector<8x96xf32> to vector<8x32xf32>
    %36 = vector.extract_strided_slice %26 {offsets = [0, 32], sizes = [8, 32], strides = [1, 1]} : vector<8x96xf32> to vector<8x32xf32>
    %37 = arith.addf %35, %36 : vector<8x32xf32>
    %38 = arith.negf %37 : vector<8x32xf32>
    %39 = math.exp %38 : vector<8x32xf32>
    %cst_18 = arith.constant 1.000000e+00 : f32
    %40 = vector.broadcast %cst_18 : f32 to vector<8x32xf32>
    %41 = arith.addf %40, %39 : vector<8x32xf32>
    %42 = arith.divf %40, %41 : vector<8x32xf32>
    %43 = vector.extract_strided_slice %23 {offsets = [0, 64], sizes = [8, 32], strides = [1, 1]} : vector<8x96xf32> to vector<8x32xf32>
    %44 = vector.extract_strided_slice %26 {offsets = [0, 64], sizes = [8, 32], strides = [1, 1]} : vector<8x96xf32> to vector<8x32xf32>
    %45 = arith.mulf %34, %44 : vector<8x32xf32>
    %46 = arith.addf %43, %45 : vector<8x32xf32>
    %47 = math.tanh %46 : vector<8x32xf32>
    %cst_19 = arith.constant 1.000000e+00 : f32
    %48 = vector.broadcast %cst_19 : f32 to vector<8x32xf32>
    %49 = arith.subf %48, %42 : vector<8x32xf32>
    %50 = arith.mulf %49, %47 : vector<8x32xf32>
    %51 = arith.mulf %42, %22 : vector<8x32xf32>
    %52 = arith.addf %50, %51 : vector<8x32xf32>
    %c0_20 = arith.constant 0 : index
    %c0_21 = arith.constant 0 : index
    %53 = vector.load %arg5[%c0_20, %c0_21] : memref<64x32xf32, #tpu.memory_space<vmem>>, vector<8x32xf32>
    tpu.vector_store %arg5[%c0_20, %c0_21], %52 {strides = array<i32>} : memref<64x32xf32, #tpu.memory_space<vmem>>, vector<8x32xf32>,
    %54 = vector.extract_strided_slice %19 {offsets = [8, 0], sizes = [8, 96], strides = [1, 1]} : vector<64x96xf32> to vector<8x96xf32>
    %cst_22 = arith.constant dense<0.000000e+00> : vector<8x96xf32>
    %55 = tpu.matmul %52, %20, %cst_22 {dimension_numbers = #tpu.dot_dimension_numbers<[1], [0], [0], [1], [0, 0, 1, 1], [], []>} : vector<8x32xf32>, vector<32x96xf32>, vector<8x96xf32> -> vector<8x96xf32>
    %56 = vector.broadcast %21 : vector<1x96xf32> to vector<8x96xf32>
    %57 = arith.addf %55, %56 : vector<8x96xf32>
    %58 = vector.extract_strided_slice %54 {offsets = [0, 0], sizes = [8, 32], strides = [1, 1]} : vector<8x96xf32> to vector<8x32xf32>
    %59 = vector.extract_strided_slice %57 {offsets = [0, 0], sizes = [8, 32], strides = [1, 1]} : vector<8x96xf32> to vector<8x32xf32>
    %60 = arith.addf %58, %59 : vector<8x32xf32>
    %61 = arith.negf %60 : vector<8x32xf32>
    %62 = math.exp %61 : vector<8x32xf32>
    %cst_23 = arith.constant 1.000000e+00 : f32
    %63 = vector.broadcast %cst_23 : f32 to vector<8x32xf32>
    %64 = arith.addf %63, %62 : vector<8x32xf32>
    %65 = arith.divf %63, %64 : vector<8x32xf32>
    %66 = vector.extract_strided_slice %54 {offsets = [0, 32], sizes = [8, 32], strides = [1, 1]} : vector<8x96xf32> to vector<8x32xf32>
    %67 = vector.extract_strided_slice %57 {offsets = [0, 32], sizes = [8, 32], strides = [1, 1]} : vector<8x96xf32> to vector<8x32xf32>
    %68 = arith.addf %66, %67 : vector<8x32xf32>
    %69 = arith.negf %68 : vector<8x32xf32>
    %70 = math.exp %69 : vector<8x32xf32>
    %cst_24 = arith.constant 1.000000e+00 : f32
    %71 = vector.broadcast %cst_24 : f32 to vector<8x32xf32>
    %72 = arith.addf %71, %70 : vector<8x32xf32>
    %73 = arith.divf %71, %72 : vector<8x32xf32>
    %74 = vector.extract_strided_slice %54 {offsets = [0, 64], sizes = [8, 32], strides = [1, 1]} : vector<8x96xf32> to vector<8x32xf32>
    %75 = vector.extract_strided_slice %57 {offsets = [0, 64], sizes = [8, 32], strides = [1, 1]} : vector<8x96xf32> to vector<8x32xf32>
    %76 = arith.mulf %65, %75 : vector<8x32xf32>
    %77 = arith.addf %74, %76 : vector<8x32xf32>
    %78 = math.tanh %77 : vector<8x32xf32>
    %cst_25 = arith.constant 1.000000e+00 : f32
    %79 = vector.broadcast %cst_25 : f32 to vector<8x32xf32>
    %80 = arith.subf %79, %73 : vector<8x32xf32>
    %81 = arith.mulf %80, %78 : vector<8x32xf32>
    %82 = arith.mulf %73, %52 : vector<8x32xf32>
    %83 = arith.addf %81, %82 : vector<8x32xf32>
    %c8 = arith.constant 8 : index
    %c0_26 = arith.constant 0 : index
    %84 = vector.load %arg5[%c8, %c0_26] : memref<64x32xf32, #tpu.memory_space<vmem>>, vector<8x32xf32>
    tpu.vector_store %arg5[%c8, %c0_26], %83 {strides = array<i32>} : memref<64x32xf32, #tpu.memory_space<vmem>>, vector<8x32xf32>,
    %85 = vector.extract_strided_slice %19 {offsets = [16, 0], sizes = [8, 96], strides = [1, 1]} : vector<64x96xf32> to vector<8x96xf32>
    %cst_27 = arith.constant dense<0.000000e+00> : vector<8x96xf32>
    %86 = tpu.matmul %83, %20, %cst_27 {dimension_numbers = #tpu.dot_dimension_numbers<[1], [0], [0], [1], [0, 0, 1, 1], [], []>} : vector<8x32xf32>, vector<32x96xf32>, vector<8x96xf32> -> vector<8x96xf32>
    %87 = vector.broadcast %21 : vector<1x96xf32> to vector<8x96xf32>
    %88 = arith.addf %86, %87 : vector<8x96xf32>
    %89 = vector.extract_strided_slice %85 {offsets = [0, 0], sizes = [8, 32], strides = [1, 1]} : vector<8x96xf32> to vector<8x32xf32>
    %90 = vector.extract_strided_slice %88 {offsets = [0, 0], sizes = [8, 32], strides = [1, 1]} : vector<8x96xf32> to vector<8x32xf32>
    %91 = arith.addf %89, %90 : vector<8x32xf32>
    %92 = arith.negf %91 : vector<8x32xf32>
    %93 = math.exp %92 : vector<8x32xf32>
    %cst_28 = arith.constant 1.000000e+00 : f32
    %94 = vector.broadcast %cst_28 : f32 to vector<8x32xf32>
    %95 = arith.addf %94, %93 : vector<8x32xf32>
    %96 = arith.divf %94, %95 : vector<8x32xf32>
    %97 = vector.extract_strided_slice %85 {offsets = [0, 32], sizes = [8, 32], strides = [1, 1]} : vector<8x96xf32> to vector<8x32xf32>
    %98 = vector.extract_strided_slice %88 {offsets = [0, 32], sizes = [8, 32], strides = [1, 1]} : vector<8x96xf32> to vector<8x32xf32>
    %99 = arith.addf %97, %98 : vector<8x32xf32>
    %100 = arith.negf %99 : vector<8x32xf32>
    %101 = math.exp %100 : vector<8x32xf32>
    %cst_29 = arith.constant 1.000000e+00 : f32
    %102 = vector.broadcast %cst_29 : f32 to vector<8x32xf32>
    %103 = arith.addf %102, %101 : vector<8x32xf32>
    %104 = arith.divf %102, %103 : vector<8x32xf32>
    %105 = vector.extract_strided_slice %85 {offsets = [0, 64], sizes = [8, 32], strides = [1, 1]} : vector<8x96xf32> to vector<8x32xf32>
    %106 = vector.extract_strided_slice %88 {offsets = [0, 64], sizes = [8, 32], strides = [1, 1]} : vector<8x96xf32> to vector<8x32xf32>
    %107 = arith.mulf %96, %106 : vector<8x32xf32>
    %108 = arith.addf %105, %107 : vector<8x32xf32>
    %109 = math.tanh %108 : vector<8x32xf32>
    %cst_30 = arith.constant 1.000000e+00 : f32
    %110 = vector.broadcast %cst_30 : f32 to vector<8x32xf32>
    %111 = arith.subf %110, %104 : vector<8x32xf32>
    %112 = arith.mulf %111, %109 : vector<8x32xf32>
    %113 = arith.mulf %104, %83 : vector<8x32xf32>
    %114 = arith.addf %112, %113 : vector<8x32xf32>
    %c16_31 = arith.constant 16 : index
    %c0_32 = arith.constant 0 : index
    %115 = vector.load %arg5[%c16_31, %c0_32] : memref<64x32xf32, #tpu.memory_space<vmem>>, vector<8x32xf32>
    tpu.vector_store %arg5[%c16_31, %c0_32], %114 {strides = array<i32>} : memref<64x32xf32, #tpu.memory_space<vmem>>, vector<8x32xf32>,
    %116 = vector.extract_strided_slice %19 {offsets = [24, 0], sizes = [8, 96], strides = [1, 1]} : vector<64x96xf32> to vector<8x96xf32>
    %cst_33 = arith.constant dense<0.000000e+00> : vector<8x96xf32>
    %117 = tpu.matmul %114, %20, %cst_33 {dimension_numbers = #tpu.dot_dimension_numbers<[1], [0], [0], [1], [0, 0, 1, 1], [], []>} : vector<8x32xf32>, vector<32x96xf32>, vector<8x96xf32> -> vector<8x96xf32>
    %118 = vector.broadcast %21 : vector<1x96xf32> to vector<8x96xf32>
    %119 = arith.addf %117, %118 : vector<8x96xf32>
    %120 = vector.extract_strided_slice %116 {offsets = [0, 0], sizes = [8, 32], strides = [1, 1]} : vector<8x96xf32> to vector<8x32xf32>
    %121 = vector.extract_strided_slice %119 {offsets = [0, 0], sizes = [8, 32], strides = [1, 1]} : vector<8x96xf32> to vector<8x32xf32>
    %122 = arith.addf %120, %121 : vector<8x32xf32>
    %123 = arith.negf %122 : vector<8x32xf32>
    %124 = math.exp %123 : vector<8x32xf32>
    %cst_34 = arith.constant 1.000000e+00 : f32
    %125 = vector.broadcast %cst_34 : f32 to vector<8x32xf32>
    %126 = arith.addf %125, %124 : vector<8x32xf32>
    %127 = arith.divf %125, %126 : vector<8x32xf32>
    %128 = vector.extract_strided_slice %116 {offsets = [0, 32], sizes = [8, 32], strides = [1, 1]} : vector<8x96xf32> to vector<8x32xf32>
    %129 = vector.extract_strided_slice %119 {offsets = [0, 32], sizes = [8, 32], strides = [1, 1]} : vector<8x96xf32> to vector<8x32xf32>
    %130 = arith.addf %128, %129 : vector<8x32xf32>
    %131 = arith.negf %130 : vector<8x32xf32>
    %132 = math.exp %131 : vector<8x32xf32>
    %cst_35 = arith.constant 1.000000e+00 : f32
    %133 = vector.broadcast %cst_35 : f32 to vector<8x32xf32>
    %134 = arith.addf %133, %132 : vector<8x32xf32>
    %135 = arith.divf %133, %134 : vector<8x32xf32>
    %136 = vector.extract_strided_slice %116 {offsets = [0, 64], sizes = [8, 32], strides = [1, 1]} : vector<8x96xf32> to vector<8x32xf32>
    %137 = vector.extract_strided_slice %119 {offsets = [0, 64], sizes = [8, 32], strides = [1, 1]} : vector<8x96xf32> to vector<8x32xf32>
    %138 = arith.mulf %127, %137 : vector<8x32xf32>
    %139 = arith.addf %136, %138 : vector<8x32xf32>
    %140 = math.tanh %139 : vector<8x32xf32>
    %cst_36 = arith.constant 1.000000e+00 : f32
    %141 = vector.broadcast %cst_36 : f32 to vector<8x32xf32>
    %142 = arith.subf %141, %135 : vector<8x32xf32>
    %143 = arith.mulf %142, %140 : vector<8x32xf32>
    %144 = arith.mulf %135, %114 : vector<8x32xf32>
    %145 = arith.addf %143, %144 : vector<8x32xf32>
    %c24 = arith.constant 24 : index
    %c0_37 = arith.constant 0 : index
    %146 = vector.load %arg5[%c24, %c0_37] : memref<64x32xf32, #tpu.memory_space<vmem>>, vector<8x32xf32>
    tpu.vector_store %arg5[%c24, %c0_37], %145 {strides = array<i32>} : memref<64x32xf32, #tpu.memory_space<vmem>>, vector<8x32xf32>,
    %147 = vector.extract_strided_slice %19 {offsets = [32, 0], sizes = [8, 96], strides = [1, 1]} : vector<64x96xf32> to vector<8x96xf32>
    %cst_38 = arith.constant dense<0.000000e+00> : vector<8x96xf32>
    %148 = tpu.matmul %145, %20, %cst_38 {dimension_numbers = #tpu.dot_dimension_numbers<[1], [0], [0], [1], [0, 0, 1, 1], [], []>} : vector<8x32xf32>, vector<32x96xf32>, vector<8x96xf32> -> vector<8x96xf32>
    %149 = vector.broadcast %21 : vector<1x96xf32> to vector<8x96xf32>
    %150 = arith.addf %148, %149 : vector<8x96xf32>
    %151 = vector.extract_strided_slice %147 {offsets = [0, 0], sizes = [8, 32], strides = [1, 1]} : vector<8x96xf32> to vector<8x32xf32>
    %152 = vector.extract_strided_slice %150 {offsets = [0, 0], sizes = [8, 32], strides = [1, 1]} : vector<8x96xf32> to vector<8x32xf32>
    %153 = arith.addf %151, %152 : vector<8x32xf32>
    %154 = arith.negf %153 : vector<8x32xf32>
    %155 = math.exp %154 : vector<8x32xf32>
    %cst_39 = arith.constant 1.000000e+00 : f32
    %156 = vector.broadcast %cst_39 : f32 to vector<8x32xf32>
    %157 = arith.addf %156, %155 : vector<8x32xf32>
    %158 = arith.divf %156, %157 : vector<8x32xf32>
    %159 = vector.extract_strided_slice %147 {offsets = [0, 32], sizes = [8, 32], strides = [1, 1]} : vector<8x96xf32> to vector<8x32xf32>
    %160 = vector.extract_strided_slice %150 {offsets = [0, 32], sizes = [8, 32], strides = [1, 1]} : vector<8x96xf32> to vector<8x32xf32>
    %161 = arith.addf %159, %160 : vector<8x32xf32>
    %162 = arith.negf %161 : vector<8x32xf32>
    %163 = math.exp %162 : vector<8x32xf32>
    %cst_40 = arith.constant 1.000000e+00 : f32
    %164 = vector.broadcast %cst_40 : f32 to vector<8x32xf32>
    %165 = arith.addf %164, %163 : vector<8x32xf32>
    %166 = arith.divf %164, %165 : vector<8x32xf32>
    %167 = vector.extract_strided_slice %147 {offsets = [0, 64], sizes = [8, 32], strides = [1, 1]} : vector<8x96xf32> to vector<8x32xf32>
    %168 = vector.extract_strided_slice %150 {offsets = [0, 64], sizes = [8, 32], strides = [1, 1]} : vector<8x96xf32> to vector<8x32xf32>
    %169 = arith.mulf %158, %168 : vector<8x32xf32>
    %170 = arith.addf %167, %169 : vector<8x32xf32>
    %171 = math.tanh %170 : vector<8x32xf32>
    %cst_41 = arith.constant 1.000000e+00 : f32
    %172 = vector.broadcast %cst_41 : f32 to vector<8x32xf32>
    %173 = arith.subf %172, %166 : vector<8x32xf32>
    %174 = arith.mulf %173, %171 : vector<8x32xf32>
    %175 = arith.mulf %166, %145 : vector<8x32xf32>
    %176 = arith.addf %174, %175 : vector<8x32xf32>
    %c32 = arith.constant 32 : index
    %c0_42 = arith.constant 0 : index
    %177 = vector.load %arg5[%c32, %c0_42] : memref<64x32xf32, #tpu.memory_space<vmem>>, vector<8x32xf32>
    tpu.vector_store %arg5[%c32, %c0_42], %176 {strides = array<i32>} : memref<64x32xf32, #tpu.memory_space<vmem>>, vector<8x32xf32>,
    %178 = vector.extract_strided_slice %19 {offsets = [40, 0], sizes = [8, 96], strides = [1, 1]} : vector<64x96xf32> to vector<8x96xf32>
    %cst_43 = arith.constant dense<0.000000e+00> : vector<8x96xf32>
    %179 = tpu.matmul %176, %20, %cst_43 {dimension_numbers = #tpu.dot_dimension_numbers<[1], [0], [0], [1], [0, 0, 1, 1], [], []>} : vector<8x32xf32>, vector<32x96xf32>, vector<8x96xf32> -> vector<8x96xf32>
    %180 = vector.broadcast %21 : vector<1x96xf32> to vector<8x96xf32>
    %181 = arith.addf %179, %180 : vector<8x96xf32>
    %182 = vector.extract_strided_slice %178 {offsets = [0, 0], sizes = [8, 32], strides = [1, 1]} : vector<8x96xf32> to vector<8x32xf32>
    %183 = vector.extract_strided_slice %181 {offsets = [0, 0], sizes = [8, 32], strides = [1, 1]} : vector<8x96xf32> to vector<8x32xf32>
    %184 = arith.addf %182, %183 : vector<8x32xf32>
    %185 = arith.negf %184 : vector<8x32xf32>
    %186 = math.exp %185 : vector<8x32xf32>
    %cst_44 = arith.constant 1.000000e+00 : f32
    %187 = vector.broadcast %cst_44 : f32 to vector<8x32xf32>
    %188 = arith.addf %187, %186 : vector<8x32xf32>
    %189 = arith.divf %187, %188 : vector<8x32xf32>
    %190 = vector.extract_strided_slice %178 {offsets = [0, 32], sizes = [8, 32], strides = [1, 1]} : vector<8x96xf32> to vector<8x32xf32>
    %191 = vector.extract_strided_slice %181 {offsets = [0, 32], sizes = [8, 32], strides = [1, 1]} : vector<8x96xf32> to vector<8x32xf32>
    %192 = arith.addf %190, %191 : vector<8x32xf32>
    %193 = arith.negf %192 : vector<8x32xf32>
    %194 = math.exp %193 : vector<8x32xf32>
    %cst_45 = arith.constant 1.000000e+00 : f32
    %195 = vector.broadcast %cst_45 : f32 to vector<8x32xf32>
    %196 = arith.addf %195, %194 : vector<8x32xf32>
    %197 = arith.divf %195, %196 : vector<8x32xf32>
    %198 = vector.extract_strided_slice %178 {offsets = [0, 64], sizes = [8, 32], strides = [1, 1]} : vector<8x96xf32> to vector<8x32xf32>
    %199 = vector.extract_strided_slice %181 {offsets = [0, 64], sizes = [8, 32], strides = [1, 1]} : vector<8x96xf32> to vector<8x32xf32>
    %200 = arith.mulf %189, %199 : vector<8x32xf32>
    %201 = arith.addf %198, %200 : vector<8x32xf32>
    %202 = math.tanh %201 : vector<8x32xf32>
    %cst_46 = arith.constant 1.000000e+00 : f32
    %203 = vector.broadcast %cst_46 : f32 to vector<8x32xf32>
    %204 = arith.subf %203, %197 : vector<8x32xf32>
    %205 = arith.mulf %204, %202 : vector<8x32xf32>
    %206 = arith.mulf %197, %176 : vector<8x32xf32>
    %207 = arith.addf %205, %206 : vector<8x32xf32>
    %c40 = arith.constant 40 : index
    %c0_47 = arith.constant 0 : index
    %208 = vector.load %arg5[%c40, %c0_47] : memref<64x32xf32, #tpu.memory_space<vmem>>, vector<8x32xf32>
    tpu.vector_store %arg5[%c40, %c0_47], %207 {strides = array<i32>} : memref<64x32xf32, #tpu.memory_space<vmem>>, vector<8x32xf32>,
    %209 = vector.extract_strided_slice %19 {offsets = [48, 0], sizes = [8, 96], strides = [1, 1]} : vector<64x96xf32> to vector<8x96xf32>
    %cst_48 = arith.constant dense<0.000000e+00> : vector<8x96xf32>
    %210 = tpu.matmul %207, %20, %cst_48 {dimension_numbers = #tpu.dot_dimension_numbers<[1], [0], [0], [1], [0, 0, 1, 1], [], []>} : vector<8x32xf32>, vector<32x96xf32>, vector<8x96xf32> -> vector<8x96xf32>
    %211 = vector.broadcast %21 : vector<1x96xf32> to vector<8x96xf32>
    %212 = arith.addf %210, %211 : vector<8x96xf32>
    %213 = vector.extract_strided_slice %209 {offsets = [0, 0], sizes = [8, 32], strides = [1, 1]} : vector<8x96xf32> to vector<8x32xf32>
    %214 = vector.extract_strided_slice %212 {offsets = [0, 0], sizes = [8, 32], strides = [1, 1]} : vector<8x96xf32> to vector<8x32xf32>
    %215 = arith.addf %213, %214 : vector<8x32xf32>
    %216 = arith.negf %215 : vector<8x32xf32>
    %217 = math.exp %216 : vector<8x32xf32>
    %cst_49 = arith.constant 1.000000e+00 : f32
    %218 = vector.broadcast %cst_49 : f32 to vector<8x32xf32>
    %219 = arith.addf %218, %217 : vector<8x32xf32>
    %220 = arith.divf %218, %219 : vector<8x32xf32>
    %221 = vector.extract_strided_slice %209 {offsets = [0, 32], sizes = [8, 32], strides = [1, 1]} : vector<8x96xf32> to vector<8x32xf32>
    %222 = vector.extract_strided_slice %212 {offsets = [0, 32], sizes = [8, 32], strides = [1, 1]} : vector<8x96xf32> to vector<8x32xf32>
    %223 = arith.addf %221, %222 : vector<8x32xf32>
    %224 = arith.negf %223 : vector<8x32xf32>
    %225 = math.exp %224 : vector<8x32xf32>
    %cst_50 = arith.constant 1.000000e+00 : f32
    %226 = vector.broadcast %cst_50 : f32 to vector<8x32xf32>
    %227 = arith.addf %226, %225 : vector<8x32xf32>
    %228 = arith.divf %226, %227 : vector<8x32xf32>
    %229 = vector.extract_strided_slice %209 {offsets = [0, 64], sizes = [8, 32], strides = [1, 1]} : vector<8x96xf32> to vector<8x32xf32>
    %230 = vector.extract_strided_slice %212 {offsets = [0, 64], sizes = [8, 32], strides = [1, 1]} : vector<8x96xf32> to vector<8x32xf32>
    %231 = arith.mulf %220, %230 : vector<8x32xf32>
    %232 = arith.addf %229, %231 : vector<8x32xf32>
    %233 = math.tanh %232 : vector<8x32xf32>
    %cst_51 = arith.constant 1.000000e+00 : f32
    %234 = vector.broadcast %cst_51 : f32 to vector<8x32xf32>
    %235 = arith.subf %234, %228 : vector<8x32xf32>
    %236 = arith.mulf %235, %233 : vector<8x32xf32>
    %237 = arith.mulf %228, %207 : vector<8x32xf32>
    %238 = arith.addf %236, %237 : vector<8x32xf32>
    %c48_52 = arith.constant 48 : index
    %c0_53 = arith.constant 0 : index
    %239 = vector.load %arg5[%c48_52, %c0_53] : memref<64x32xf32, #tpu.memory_space<vmem>>, vector<8x32xf32>
    tpu.vector_store %arg5[%c48_52, %c0_53], %238 {strides = array<i32>} : memref<64x32xf32, #tpu.memory_space<vmem>>, vector<8x32xf32>,
    %240 = vector.extract_strided_slice %19 {offsets = [56, 0], sizes = [8, 96], strides = [1, 1]} : vector<64x96xf32> to vector<8x96xf32>
    %cst_54 = arith.constant dense<0.000000e+00> : vector<8x96xf32>
    %241 = tpu.matmul %238, %20, %cst_54 {dimension_numbers = #tpu.dot_dimension_numbers<[1], [0], [0], [1], [0, 0, 1, 1], [], []>} : vector<8x32xf32>, vector<32x96xf32>, vector<8x96xf32> -> vector<8x96xf32>
    %242 = vector.broadcast %21 : vector<1x96xf32> to vector<8x96xf32>
    %243 = arith.addf %241, %242 : vector<8x96xf32>
    %244 = vector.extract_strided_slice %240 {offsets = [0, 0], sizes = [8, 32], strides = [1, 1]} : vector<8x96xf32> to vector<8x32xf32>
    %245 = vector.extract_strided_slice %243 {offsets = [0, 0], sizes = [8, 32], strides = [1, 1]} : vector<8x96xf32> to vector<8x32xf32>
    %246 = arith.addf %244, %245 : vector<8x32xf32>
    %247 = arith.negf %246 : vector<8x32xf32>
    %248 = math.exp %247 : vector<8x32xf32>
    %cst_55 = arith.constant 1.000000e+00 : f32
    %249 = vector.broadcast %cst_55 : f32 to vector<8x32xf32>
    %250 = arith.addf %249, %248 : vector<8x32xf32>
    %251 = arith.divf %249, %250 : vector<8x32xf32>
    %252 = vector.extract_strided_slice %240 {offsets = [0, 32], sizes = [8, 32], strides = [1, 1]} : vector<8x96xf32> to vector<8x32xf32>
    %253 = vector.extract_strided_slice %243 {offsets = [0, 32], sizes = [8, 32], strides = [1, 1]} : vector<8x96xf32> to vector<8x32xf32>
    %254 = arith.addf %252, %253 : vector<8x32xf32>
    %255 = arith.negf %254 : vector<8x32xf32>
    %256 = math.exp %255 : vector<8x32xf32>
    %cst_56 = arith.constant 1.000000e+00 : f32
    %257 = vector.broadcast %cst_56 : f32 to vector<8x32xf32>
    %258 = arith.addf %257, %256 : vector<8x32xf32>
    %259 = arith.divf %257, %258 : vector<8x32xf32>
    %260 = vector.extract_strided_slice %240 {offsets = [0, 64], sizes = [8, 32], strides = [1, 1]} : vector<8x96xf32> to vector<8x32xf32>
    %261 = vector.extract_strided_slice %243 {offsets = [0, 64], sizes = [8, 32], strides = [1, 1]} : vector<8x96xf32> to vector<8x32xf32>
    %262 = arith.mulf %251, %261 : vector<8x32xf32>
    %263 = arith.addf %260, %262 : vector<8x32xf32>
    %264 = math.tanh %263 : vector<8x32xf32>
    %cst_57 = arith.constant 1.000000e+00 : f32
    %265 = vector.broadcast %cst_57 : f32 to vector<8x32xf32>
    %266 = arith.subf %265, %259 : vector<8x32xf32>
    %267 = arith.mulf %266, %264 : vector<8x32xf32>
    %268 = arith.mulf %259, %238 : vector<8x32xf32>
    %269 = arith.addf %267, %268 : vector<8x32xf32>
    %c56 = arith.constant 56 : index
    %c0_58 = arith.constant 0 : index
    %270 = vector.load %arg5[%c56, %c0_58] : memref<64x32xf32, #tpu.memory_space<vmem>>, vector<8x32xf32>
    tpu.vector_store %arg5[%c56, %c0_58], %269 {strides = array<i32>} : memref<64x32xf32, #tpu.memory_space<vmem>>, vector<8x32xf32>,
    %c112 = arith.constant 112 : index
    %c0_59 = arith.constant 0 : index
    %271 = vector.load %arg2[%c112, %c0_59] : memref<152x96xf32, #tpu.memory_space<vmem>>, vector<32x2xf32>
    %c0_60 = arith.constant 0 : index
    %c512 = arith.constant 512 : index
    %272 = vector.load %arg3[%c0_60, %c512] : memref<1x640xf32, #tpu.memory_space<vmem>>, vector<1x2xf32>
    %c144 = arith.constant 144 : index
    %c0_61 = arith.constant 0 : index
    %273 = vector.load %arg2[%c144, %c0_61] : memref<152x96xf32, #tpu.memory_space<vmem>>, vector<8x4xf32>
    %c0_62 = arith.constant 0 : index
    %c16_63 = arith.constant 16 : index
    %274 = vector.load %arg1[%c0_62, %c16_63] : memref<64x17xf32, #tpu.memory_space<vmem>>, vector<64x1xf32>
    %c0_64 = arith.constant 0 : index
    %c0_65 = arith.constant 0 : index
    %275 = vector.load %arg5[%c0_64, %c0_65] : memref<64x32xf32, #tpu.memory_space<vmem>>, vector<64x32xf32>
    %cst_66 = arith.constant dense<0.000000e+00> : vector<64x2xf32>
    %276 = tpu.matmul %275, %271, %cst_66 {dimension_numbers = #tpu.dot_dimension_numbers<[1], [0], [0], [1], [0, 0, 1, 1], [], []>} : vector<64x32xf32>, vector<32x2xf32>, vector<64x2xf32> -> vector<64x2xf32>
    %277 = vector.broadcast %272 : vector<1x2xf32> to vector<64x2xf32>
    %278 = arith.addf %276, %277 : vector<64x2xf32>
    %279 = vector.extract_strided_slice %278 {offsets = [0, 0], sizes = [64, 1], strides = [1, 1]} : vector<64x2xf32> to vector<64x1xf32>
    %280 = vector.extract_strided_slice %278 {offsets = [0, 1], sizes = [64, 1], strides = [1, 1]} : vector<64x2xf32> to vector<64x1xf32>
    %281 = arith.mulf %274, %280 : vector<64x1xf32>
    %282 = arith.addf %279, %281 : vector<64x1xf32>
    %cst_67 = arith.constant 0.000000e+00 : f32
    %283 = vector.broadcast %cst_67 : f32 to vector<8x4xf32>
    %284 = vector.extract_strided_slice %282 {offsets = [0, 0], sizes = [8, 1], strides = [1, 1]} : vector<64x1xf32> to vector<8x1xf32>
    %285 = vector.extract_strided_slice %273 {offsets = [0, 0], sizes = [1, 4], strides = [1, 1]} : vector<8x4xf32> to vector<1x4xf32>
    %286 = vector.broadcast %284 : vector<8x1xf32> to vector<8x4xf32>
    %287 = vector.broadcast %285 : vector<1x4xf32> to vector<8x4xf32>
    %288 = arith.mulf %286, %287 : vector<8x4xf32>
    %289 = arith.addf %283, %288 : vector<8x4xf32>
    %290 = vector.extract_strided_slice %282 {offsets = [8, 0], sizes = [8, 1], strides = [1, 1]} : vector<64x1xf32> to vector<8x1xf32>
    %291 = vector.extract_strided_slice %273 {offsets = [1, 0], sizes = [1, 4], strides = [1, 1]} : vector<8x4xf32> to vector<1x4xf32>
    %292 = vector.broadcast %290 : vector<8x1xf32> to vector<8x4xf32>
    %293 = vector.broadcast %291 : vector<1x4xf32> to vector<8x4xf32>
    %294 = arith.mulf %292, %293 : vector<8x4xf32>
    %295 = arith.addf %289, %294 : vector<8x4xf32>
    %296 = vector.extract_strided_slice %282 {offsets = [16, 0], sizes = [8, 1], strides = [1, 1]} : vector<64x1xf32> to vector<8x1xf32>
    %297 = vector.extract_strided_slice %273 {offsets = [2, 0], sizes = [1, 4], strides = [1, 1]} : vector<8x4xf32> to vector<1x4xf32>
    %298 = vector.broadcast %296 : vector<8x1xf32> to vector<8x4xf32>
    %299 = vector.broadcast %297 : vector<1x4xf32> to vector<8x4xf32>
    %300 = arith.mulf %298, %299 : vector<8x4xf32>
    %301 = arith.addf %295, %300 : vector<8x4xf32>
    %302 = vector.extract_strided_slice %282 {offsets = [24, 0], sizes = [8, 1], strides = [1, 1]} : vector<64x1xf32> to vector<8x1xf32>
    %303 = vector.extract_strided_slice %273 {offsets = [3, 0], sizes = [1, 4], strides = [1, 1]} : vector<8x4xf32> to vector<1x4xf32>
    %304 = vector.broadcast %302 : vector<8x1xf32> to vector<8x4xf32>
    %305 = vector.broadcast %303 : vector<1x4xf32> to vector<8x4xf32>
    %306 = arith.mulf %304, %305 : vector<8x4xf32>
    %307 = arith.addf %301, %306 : vector<8x4xf32>
    %308 = vector.extract_strided_slice %282 {offsets = [32, 0], sizes = [8, 1], strides = [1, 1]} : vector<64x1xf32> to vector<8x1xf32>
    %309 = vector.extract_strided_slice %273 {offsets = [4, 0], sizes = [1, 4], strides = [1, 1]} : vector<8x4xf32> to vector<1x4xf32>
    %310 = vector.broadcast %308 : vector<8x1xf32> to vector<8x4xf32>
    %311 = vector.broadcast %309 : vector<1x4xf32> to vector<8x4xf32>
    %312 = arith.mulf %310, %311 : vector<8x4xf32>
    %313 = arith.addf %307, %312 : vector<8x4xf32>
    %314 = vector.extract_strided_slice %282 {offsets = [40, 0], sizes = [8, 1], strides = [1, 1]} : vector<64x1xf32> to vector<8x1xf32>
    %315 = vector.extract_strided_slice %273 {offsets = [5, 0], sizes = [1, 4], strides = [1, 1]} : vector<8x4xf32> to vector<1x4xf32>
    %316 = vector.broadcast %314 : vector<8x1xf32> to vector<8x4xf32>
    %317 = vector.broadcast %315 : vector<1x4xf32> to vector<8x4xf32>
    %318 = arith.mulf %316, %317 : vector<8x4xf32>
    %319 = arith.addf %313, %318 : vector<8x4xf32>
    %320 = vector.extract_strided_slice %282 {offsets = [48, 0], sizes = [8, 1], strides = [1, 1]} : vector<64x1xf32> to vector<8x1xf32>
    %321 = vector.extract_strided_slice %273 {offsets = [6, 0], sizes = [1, 4], strides = [1, 1]} : vector<8x4xf32> to vector<1x4xf32>
    %322 = vector.broadcast %320 : vector<8x1xf32> to vector<8x4xf32>
    %323 = vector.broadcast %321 : vector<1x4xf32> to vector<8x4xf32>
    %324 = arith.mulf %322, %323 : vector<8x4xf32>
    %325 = arith.addf %319, %324 : vector<8x4xf32>
    %326 = vector.extract_strided_slice %282 {offsets = [56, 0], sizes = [8, 1], strides = [1, 1]} : vector<64x1xf32> to vector<8x1xf32>
    %327 = vector.extract_strided_slice %273 {offsets = [7, 0], sizes = [1, 4], strides = [1, 1]} : vector<8x4xf32> to vector<1x4xf32>
    %328 = vector.broadcast %326 : vector<8x1xf32> to vector<8x4xf32>
    %329 = vector.broadcast %327 : vector<1x4xf32> to vector<8x4xf32>
    %330 = arith.mulf %328, %329 : vector<8x4xf32>
    %331 = arith.addf %325, %330 : vector<8x4xf32>
    %cst_68 = arith.constant dense<0xFF800000> : vector<8xf32>
    %332 = vector.multi_reduction <maximumf>, %331, %cst_68 [1] : vector<8x4xf32> to vector<8xf32>
    %333 = vector.shape_cast %332 : vector<8xf32> to vector<8x1xf32>
    %334 = vector.broadcast %333 : vector<8x1xf32> to vector<8x4xf32>
    %335 = arith.subf %331, %334 : vector<8x4xf32>
    %336 = math.exp %335 : vector<8x4xf32>
    %cst_69 = arith.constant dense<0.000000e+00> : vector<8xf32>
    %337 = vector.multi_reduction <add>, %336, %cst_69 [1] : vector<8x4xf32> to vector<8xf32>
    %338 = vector.shape_cast %337 : vector<8xf32> to vector<8x1xf32>
    %339 = vector.broadcast %338 : vector<8x1xf32> to vector<8x4xf32>
    %340 = arith.divf %336, %339 : vector<8x4xf32>
    %341 = vector.extract_strided_slice %340 {offsets = [0, 0], sizes = [2, 4], strides = [1, 1]} : vector<8x4xf32> to vector<2x4xf32>
    %c0_70 = arith.constant 0 : index
    %c0_71 = arith.constant 0 : index
    %342 = vector.load %arg4[%c0_70, %c0_71] : memref<2x4xf32, #tpu.memory_space<vmem>>, vector<2x4xf32>
    tpu.vector_store %arg4[%c0_70, %c0_71], %341 {strides = array<i32>} : memref<2x4xf32, #tpu.memory_space<vmem>>, vector<2x4xf32>,
    return
  }
  func.func @transform_0(%arg0: i32) -> (i32, i32) {
    %c0_i32 = arith.constant 0 : i32
    %c0_i32_0 = arith.constant 0 : i32
    %c0_i32_1 = arith.constant 0 : i32
    return %c0_i32, %c0_i32_0 : i32, i32
  }
  func.func @transform_1(%arg0: i32) -> (i32, i32) {
    %c0_i32 = arith.constant 0 : i32
    %c0_i32_0 = arith.constant 0 : i32
    %c0_i32_1 = arith.constant 0 : i32
    return %c0_i32, %c0_i32_0 : i32, i32
  }
  func.func @transform_2(%arg0: i32) -> (i32, i32) {
    %c0_i32 = arith.constant 0 : i32
    %c0_i32_0 = arith.constant 0 : i32
    %c0_i32_1 = arith.constant 0 : i32
    return %c0_i32, %c0_i32_0 : i32, i32
  }
  func.func @transform_3(%arg0: i32) -> (i32, i32) {
    %c0_i32 = arith.constant 0 : i32
    %c0_i32_0 = arith.constant 0 : i32
    %c0_i32_1 = arith.constant 0 : i32
    return %c0_i32, %c0_i32_0 : i32, i32
  }
}

</mosaic_0001>

<llo_original>
// kernel: dgaussian_forward.1
$region0: #{dgaussian_forward.1}
  #allocation0 [shape = 'u32[]', space=smem, size = 0x4, offset = 0x4, fixed_abs, tag = 'smem constant byte address 0x4 - core index']
  #allocation1 [shape = 'u32[144,128]{1,0:T(1,128)}', space=vmem, size = 0x12000, scoped, tag = 'internal scratch']
  #allocation2 [shape = 'f32[64,32]{1,0:T(8,128)}', space=vmem, size = 0x8000, scoped, tag = 'scratch operand']
  %s0 = inlined_call_operand.vmem [shape: f32[64,17], index: 0, kind: input, shape index: {}]
  %s1 = inlined_call_operand.vmem [shape: f32[152,96], index: 1, kind: input, shape index: {}]
  %s2 = inlined_call_operand.vmem [shape: f32[1,640], index: 2, kind: input, shape index: {}]
  %s3 = inlined_call_operand.hbm [shape: f32[2,4], index: 3, kind: output, shape index: {}]
  %s4 = sld [smem:[#allocation0]]
  $region22: #{dgaussian_forward.1} parent=0
    _
  %s6 = ssub.s32 1, %s4
  %s7 = scalar_select 0, %s6, %s4
  $region1: #{dgaussian_forward.1} parent=0
    #allocation3 [shape = 'u8[1024]{0}', space=vmem, size = 0x400, scoped, tag = 'output window, operand 0, single buffered']
    #allocation4 [shape = 's32[1]{0}', space=sflag, size = 0x4, scoped, tag = 'scoped memory for dgaussian_forward.1']
    %8 = vsyncpa [#allocation4], 0
    // Predicated region
    $region2: #{dgaussian_forward.1} parent=1 // pred_check
      _
    $region3: #{dgaussian_forward.1} parent=1 // pred_check_branch
      %10 = sbr.rel (0) target = $region5
    $region4: #{dgaussian_forward.1} parent=1 // pred_region
      _
    $region5: #{dgaussian_forward.1} parent=1 // pred_fallthru
      _
    // Predicated region
    $region6: #{dgaussian_forward.1} parent=1 // pred_check
      _
    $region7: #{dgaussian_forward.1} parent=1 // pred_check_branch
      %12 = sbr.rel (0) target = $region9
    $region8: #{dgaussian_forward.1} parent=1 // pred_region
      _
    $region9: #{dgaussian_forward.1} parent=1 // pred_fallthru
      _
    // Predicated region
    $region10: #{dgaussian_forward.1} parent=1 // pred_check
      _
    $region11: #{dgaussian_forward.1} parent=1 // pred_check_branch
      %14 = sbr.rel (0) target = $region13
    $region12: #{dgaussian_forward.1} parent=1 // pred_region
      _
    $region13: #{dgaussian_forward.1} parent=1 // pred_fallthru
      _
    %v15 = vld [vmem:[%s0] sm:$0xff]
    %v16 = vld [vmem:[%s0 + $0x8] sm:$0xff]
    %v17 = vld [vmem:[%s0 + $0x10] sm:$0xff]
    %v18 = vld [vmem:[%s0 + $0x18] sm:$0xff]
    %v19 = vld [vmem:[%s0 + $0x20] sm:$0xff]
    %v20 = vld [vmem:[%s0 + $0x28] sm:$0xff]
    %v21 = vld [vmem:[%s0 + $0x30] sm:$0xff]
    %v22 = vld [vmem:[%s0 + $0x38] sm:$0xff]
    %v23 = vld [vmem:[%s1] sm:$0xff]
    %v24 = vld [vmem:[%s1 + $0x8] sm:$0xff]
    %v25 = vld [vmem:[%s2] sm:$0x1]
    %v27 = vlaneseq
    %v28 = vshrl.u32 %v27, 7
    %v29 = vsub.s32 0, %v28
    %v30 = vrot.slane %v25, %v29
    %vm32 = vcmask 130048
    %v34 = vsel %vm32, %v15, 0
    %v37 = vsel %vm32, %v16, 0
    %v40 = vsel %vm32, %v17, 0
    %v43 = vsel %vm32, %v18, 0
    %v46 = vsel %vm32, %v19, 0
    %v49 = vsel %vm32, %v20, 0
    %v52 = vsel %vm32, %v21, 0
    %v55 = vsel %vm32, %v22, 0
    %57 = vmatprep.subr.mxu0 0.0
    %58 = vmatpush1.msra.mxu0 %v23
    %59 = vmatprep.subr.mxu0 0.0
    %60 = vmatpush1.msra.mxu0 %v24
    %61 = vmatprep.subr.mxu0 0.0
    %62 = vmatpush1.msra.mxu0 0.0
    %63 = vmatprep.subr.mxu0 0.0
    %64 = vmatpush1.msra.mxu0 0.0
    %65 = vmatprep.subr.mxu0 0.0
    %66 = vmatpush1.msra.mxu0 0.0
    %67 = vmatprep.subr.mxu0 0.0
    %68 = vmatpush1.msra.mxu0 0.0
    %69 = vmatprep.subr.mxu0 0.0
    %70 = vmatpush1.msra.mxu0 0.0
    %71 = vmatprep.subr.mxu0 0.0
    %72 = vmatpush1.msra.mxu0 0.0
    %73 = vmatprep.subr.mxu0 0.0
    %74 = vmatpush1.msra.mxu0 0.0
    %75 = vmatprep.subr.mxu0 0.0
    %76 = vmatpush1.msra.mxu0 0.0
    %77 = vmatprep.subr.mxu0 0.0
    %78 = vmatpush1.msra.mxu0 0.0
    %79 = vmatprep.subr.mxu0 0.0
    %80 = vmatpush1.msra.mxu0 0.0
    %81 = vmatprep.subr.mxu0 0.0
    %82 = vmatpush1.msra.mxu0 0.0
    %83 = vmatprep.subr.mxu0 0.0
    %84 = vmatpush1.msra.mxu0 0.0
    %85 = vmatprep.subr.mxu0 0.0
    %86 = vmatpush1.msra.mxu0 0.0
    %87 = vmatprep.subr.mxu0 0.0
    %88 = vmatpush1.msra.mxu0 0.0
    %89 = vmatprep.subr.mxu0 0.0
    %90 = vmatpush1.msra.mxu0 0.0
    %91 = vmatprep.subr.mxu0 0.0
    %92 = vmatpush1.msra.mxu0 0.0
    %93 = vmatprep.subr.mxu0 0.0
    %94 = vmatpush1.msra.mxu0 0.0
    %95 = vmatprep.subr.mxu0 0.0
    %96 = vmatpush1.msra.mxu0 0.0
    %97 = vmatprep.subr.mxu0 0.0
    %98 = vmatpush1.msra.mxu0 0.0
    %99 = vmatprep.subr.mxu0 0.0
    %100 = vmatpush1.msra.mxu0 0.0
    %101 = vmatprep.subr.mxu0 0.0
    %102 = vmatpush1.msra.mxu0 0.0
    %103 = vmatprep.subr.mxu0 0.0
    %104 = vmatpush1.msra.mxu0 0.0
    %105 = vmatprep.subr.mxu0 0.0
    %106 = vmatpush1.msra.mxu0 0.0
    %107 = vmatprep.subr.mxu0 0.0
    %108 = vmatpush1.msra.mxu0 0.0
    %109 = vmatprep.subr.mxu0 0.0
    %110 = vmatpush1.msra.mxu0 0.0
    %111 = vmatprep.subr.mxu0 0.0
    %112 = vmatpush1.msra.mxu0 0.0
    %113 = vmatprep.subr.mxu0 0.0
    %114 = vmatpush1.msra.mxu0 0.0
    %115 = vmatprep.subr.mxu0 0.0
    %116 = vmatpush1.msra.mxu0 0.0
    %117 = vmatprep.subr.mxu0 0.0
    %118 = vmatpush1.msra.mxu0 0.0
    %119 = vmatprep.subr.mxu0 0.0
    %120 = vmatpush1.msra.mxu0 0.0
    %121 = vmatprep.mubr.f32.mxu0 0.0
    %122 = vmatmul.mubr.f32.gmra.mrb[0].mxu0 %v34
    %v123 = vpop.f32.mrb[0].mxu0
    %v124 = vadd.f32 %v30, %v123
    %v125 = vpop.f32.mrb[0].mxu0
    %126 = vmatprep.mubr.f32.mxu0 0.0
    %127 = vmatmul.mubr.f32.gmra.mrb[0].mxu0 %v37
    %v128 = vpop.f32.mrb[0].mxu0
    %v129 = vadd.f32 %v30, %v128
    %v130 = vpop.f32.mrb[0].mxu0
    %131 = vmatprep.mubr.f32.mxu0 0.0
    %132 = vmatmul.mubr.f32.gmra.mrb[0].mxu0 %v40
    %v133 = vpop.f32.mrb[0].mxu0
    %v134 = vadd.f32 %v30, %v133
    %v135 = vpop.f32.mrb[0].mxu0
    %136 = vmatprep.mubr.f32.mxu0 0.0
    %137 = vmatmul.mubr.f32.gmra.mrb[0].mxu0 %v43
    %v138 = vpop.f32.mrb[0].mxu0
    %v139 = vadd.f32 %v30, %v138
    %v140 = vpop.f32.mrb[0].mxu0
    %141 = vmatprep.mubr.f32.mxu0 0.0
    %142 = vmatmul.mubr.f32.gmra.mrb[0].mxu0 %v46
    %v143 = vpop.f32.mrb[0].mxu0
    %v144 = vadd.f32 %v30, %v143
    %v145 = vpop.f32.mrb[0].mxu0
    %146 = vmatprep.mubr.f32.mxu0 0.0
    %147 = vmatmul.mubr.f32.gmra.mrb[0].mxu0 %v49
    %v148 = vpop.f32.mrb[0].mxu0
    %v149 = vadd.f32 %v30, %v148
    %v150 = vpop.f32.mrb[0].mxu0
    %151 = vmatprep.mubr.f32.mxu0 0.0
    %152 = vmatmul.mubr.f32.gmra.mrb[0].mxu0 %v52
    %v153 = vpop.f32.mrb[0].mxu0
    %v154 = vadd.f32 %v30, %v153
    %v155 = vpop.f32.mrb[0].mxu0
    %156 = vmatprep.mubr.f32.mxu0 0.0
    %157 = vmatmul.mubr.f32.gmra.mrb[0].mxu0 %v55
    %v158 = vpop.f32.mrb[0].mxu0
    %v159 = vadd.f32 %v30, %v158
    %v160 = vpop.f32.mrb[0].mxu0
    %161 = vdwg.mxu0
    %v162 = vmax.f32 %v124, 0.0
    %v163 = vmax.f32 %v129, 0.0
    %v164 = vmax.f32 %v134, 0.0
    %v165 = vmax.f32 %v139, 0.0
    %v166 = vmax.f32 %v144, 0.0
    %v167 = vmax.f32 %v149, 0.0
    %v168 = vmax.f32 %v154, 0.0
    %v169 = vmax.f32 %v159, 0.0
    %v170 = vld [vmem:[%s1 + $0x10] sm:$0xff]
    %v171 = vld [vmem:[%s1 + $0x18] sm:$0xff]
    %v172 = vld [vmem:[%s1 + $0x20] sm:$0xff]
    %v173 = vld [vmem:[%s1 + $0x28] sm:$0xff]
    %v174 = vld [vmem:[%s2 + $0x1] sm:$0x1]
    %v176 = vlaneseq
    %v177 = vshrl.u32 %v176, 7
    %v178 = vsub.s32 0, %v177
    %v179 = vrot.slane %v174, %v178
    %vm181 = vcmask 261120
    %v183 = vsel %vm181, %v162, 0
    %v186 = vsel %vm181, %v163, 0
    %v189 = vsel %vm181, %v164, 0
    %v192 = vsel %vm181, %v165, 0
    %v195 = vsel %vm181, %v166, 0
    %v198 = vsel %vm181, %v167, 0
    %v201 = vsel %vm181, %v168, 0
    %v204 = vsel %vm181, %v169, 0
    %206 = vmatprep.subr.mxu0 0.0
    %207 = vmatpush1.msra.mxu0 %v170
    %208 = vmatprep.subr.mxu0 0.0
    %209 = vmatpush1.msra.mxu0 %v171
    %210 = vmatprep.subr.mxu0 0.0
    %211 = vmatpush1.msra.mxu0 %v172
    %212 = vmatprep.subr.mxu0 0.0
    %213 = vmatpush1.msra.mxu0 %v173
    %214 = vmatprep.subr.mxu0 0.0
    %215 = vmatpush1.msra.mxu0 0.0
    %216 = vmatprep.subr.mxu0 0.0
    %217 = vmatpush1.msra.mxu0 0.0
    %218 = vmatprep.subr.mxu0 0.0
    %219 = vmatpush1.msra.mxu0 0.0
    %220 = vmatprep.subr.mxu0 0.0
    %221 = vmatpush1.msra.mxu0 0.0
    %222 = vmatprep.subr.mxu0 0.0
    %223 = vmatpush1.msra.mxu0 0.0
    %224 = vmatprep.subr.mxu0 0.0
    %225 = vmatpush1.msra.mxu0 0.0
    %226 = vmatprep.subr.mxu0 0.0
    %227 = vmatpush1.msra.mxu0 0.0
    %228 = vmatprep.subr.mxu0 0.0
    %229 = vmatpush1.msra.mxu0 0.0
    %230 = vmatprep.subr.mxu0 0.0
    %231 = vmatpush1.msra.mxu0 0.0
    %232 = vmatprep.subr.mxu0 0.0
    %233 = vmatpush1.msra.mxu0 0.0
    %234 = vmatprep.subr.mxu0 0.0
    %235 = vmatpush1.msra.mxu0 0.0
    %236 = vmatprep.subr.mxu0 0.0
    %237 = vmatpush1.msra.mxu0 0.0
    %238 = vmatprep.subr.mxu0 0.0
    %239 = vmatpush1.msra.mxu0 0.0
    %240 = vmatprep.subr.mxu0 0.0
    %241 = vmatpush1.msra.mxu0 0.0
    %242 = vmatprep.subr.mxu0 0.0
    %243 = vmatpush1.msra.mxu0 0.0
    %244 = vmatprep.subr.mxu0 0.0
    %245 = vmatpush1.msra.mxu0 0.0
    %246 = vmatprep.subr.mxu0 0.0
    %247 = vmatpush1.msra.mxu0 0.0
    %248 = vmatprep.subr.mxu0 0.0
    %249 = vmatpush1.msra.mxu0 0.0
    %250 = vmatprep.subr.mxu0 0.0
    %251 = vmatpush1.msra.mxu0 0.0
    %252 = vmatprep.subr.mxu0 0.0
    %253 = vmatpush1.msra.mxu0 0.0
    %254 = vmatprep.subr.mxu0 0.0
    %255 = vmatpush1.msra.mxu0 0.0
    %256 = vmatprep.subr.mxu0 0.0
    %257 = vmatpush1.msra.mxu0 0.0
    %258 = vmatprep.subr.mxu0 0.0
    %259 = vmatpush1.msra.mxu0 0.0
    %260 = vmatprep.subr.mxu0 0.0
    %261 = vmatpush1.msra.mxu0 0.0
    %262 = vmatprep.subr.mxu0 0.0
    %263 = vmatpush1.msra.mxu0 0.0
    %264 = vmatprep.subr.mxu0 0.0
    %265 = vmatpush1.msra.mxu0 0.0
    %266 = vmatprep.subr.mxu0 0.0
    %267 = vmatpush1.msra.mxu0 0.0
    %268 = vmatprep.subr.mxu0 0.0
    %269 = vmatpush1.msra.mxu0 0.0
    %270 = vmatprep.mubr.f32.mxu0 0.0
    %271 = vmatmul.mubr.f32.gmra.mrb[0].mxu0 %v183
    %v272 = vpop.f32.mrb[0].mxu0
    %v273 = vadd.f32 %v179, %v272
    %v274 = vpop.f32.mrb[0].mxu0
    %275 = vmatprep.mubr.f32.mxu0 0.0
    %276 = vmatmul.mubr.f32.gmra.mrb[0].mxu0 %v186
    %v277 = vpop.f32.mrb[0].mxu0
    %v278 = vadd.f32 %v179, %v277
    %v279 = vpop.f32.mrb[0].mxu0
    %280 = vmatprep.mubr.f32.mxu0 0.0
    %281 = vmatmul.mubr.f32.gmra.mrb[0].mxu0 %v189
    %v282 = vpop.f32.mrb[0].mxu0
    %v283 = vadd.f32 %v179, %v282
    %v284 = vpop.f32.mrb[0].mxu0
    %285 = vmatprep.mubr.f32.mxu0 0.0
    %286 = vmatmul.mubr.f32.gmra.mrb[0].mxu0 %v192
    %v287 = vpop.f32.mrb[0].mxu0
    %v288 = vadd.f32 %v179, %v287
    %v289 = vpop.f32.mrb[0].mxu0
    %290 = vmatprep.mubr.f32.mxu0 0.0
    %291 = vmatmul.mubr.f32.gmra.mrb[0].mxu0 %v195
    %v292 = vpop.f32.mrb[0].mxu0
    %v293 = vadd.f32 %v179, %v292
    %v294 = vpop.f32.mrb[0].mxu0
    %295 = vmatprep.mubr.f32.mxu0 0.0
    %296 = vmatmul.mubr.f32.gmra.mrb[0].mxu0 %v198
    %v297 = vpop.f32.mrb[0].mxu0
    %v298 = vadd.f32 %v179, %v297
    %v299 = vpop.f32.mrb[0].mxu0
    %300 = vmatprep.mubr.f32.mxu0 0.0
    %301 = vmatmul.mubr.f32.gmra.mrb[0].mxu0 %v201
    %v302 = vpop.f32.mrb[0].mxu0
    %v303 = vadd.f32 %v179, %v302
    %v304 = vpop.f32.mrb[0].mxu0
    %305 = vmatprep.mubr.f32.mxu0 0.0
    %306 = vmatmul.mubr.f32.gmra.mrb[0].mxu0 %v204
    %v307 = vpop.f32.mrb[0].mxu0
    %v308 = vadd.f32 %v179, %v307
    %v309 = vpop.f32.mrb[0].mxu0
    %310 = vdwg.mxu0
    %v311 = vmax.f32 %v273, 0.0
    %v312 = vmax.f32 %v278, 0.0
    %v313 = vmax.f32 %v283, 0.0
    %v314 = vmax.f32 %v288, 0.0
    %v315 = vmax.f32 %v293, 0.0
    %v316 = vmax.f32 %v298, 0.0
    %v317 = vmax.f32 %v303, 0.0
    %v318 = vmax.f32 %v308, 0.0
    %v319 = vld [vmem:[%s1 + $0x30] sm:$0xff]
    %v320 = vld [vmem:[%s1 + $0x38] sm:$0xff]
    %v321 = vld [vmem:[%s1 + $0x40] sm:$0xff]
    %v322 = vld [vmem:[%s1 + $0x48] sm:$0xff]
    %v323 = vld [vmem:[%s2 + $0x2] sm:$0x1]
    %v325 = vlaneseq
    %v326 = vshrl.u32 %v325, 7
    %v327 = vsub.s32 0, %v326
    %v328 = vrot.slane %v323, %v327
    %v331 = vsel %vm181, %v311, 0
    %v334 = vsel %vm181, %v312, 0
    %v337 = vsel %vm181, %v313, 0
    %v340 = vsel %vm181, %v314, 0
    %v343 = vsel %vm181, %v315, 0
    %v346 = vsel %vm181, %v316, 0
    %v349 = vsel %vm181, %v317, 0
    %v352 = vsel %vm181, %v318, 0
    %354 = vmatprep.subr.mxu0 0.0
    %355 = vmatpush1.msra.mxu0 %v319
    %356 = vmatprep.subr.mxu0 0.0
    %357 = vmatpush1.msra.mxu0 %v320
    %358 = vmatprep.subr.mxu0 0.0
    %359 = vmatpush1.msra.mxu0 %v321
    %360 = vmatprep.subr.mxu0 0.0
    %361 = vmatpush1.msra.mxu0 %v322
    %362 = vmatprep.subr.mxu0 0.0
    %363 = vmatpush1.msra.mxu0 0.0
    %364 = vmatprep.subr.mxu0 0.0
    %365 = vmatpush1.msra.mxu0 0.0
    %366 = vmatprep.subr.mxu0 0.0
    %367 = vmatpush1.msra.mxu0 0.0
    %368 = vmatprep.subr.mxu0 0.0
    %369 = vmatpush1.msra.mxu0 0.0
    %370 = vmatprep.subr.mxu0 0.0
    %371 = vmatpush1.msra.mxu0 0.0
    %372 = vmatprep.subr.mxu0 0.0
    %373 = vmatpush1.msra.mxu0 0.0
    %374 = vmatprep.subr.mxu0 0.0
    %375 = vmatpush1.msra.mxu0 0.0
    %376 = vmatprep.subr.mxu0 0.0
    %377 = vmatpush1.msra.mxu0 0.0
    %378 = vmatprep.subr.mxu0 0.0
    %379 = vmatpush1.msra.mxu0 0.0
    %380 = vmatprep.subr.mxu0 0.0
    %381 = vmatpush1.msra.mxu0 0.0
    %382 = vmatprep.subr.mxu0 0.0
    %383 = vmatpush1.msra.mxu0 0.0
    %384 = vmatprep.subr.mxu0 0.0
    %385 = vmatpush1.msra.mxu0 0.0
    %386 = vmatprep.subr.mxu0 0.0
    %387 = vmatpush1.msra.mxu0 0.0
    %388 = vmatprep.subr.mxu0 0.0
    %389 = vmatpush1.msra.mxu0 0.0
    %390 = vmatprep.subr.mxu0 0.0
    %391 = vmatpush1.msra.mxu0 0.0
    %392 = vmatprep.subr.mxu0 0.0
    %393 = vmatpush1.msra.mxu0 0.0
    %394 = vmatprep.subr.mxu0 0.0
    %395 = vmatpush1.msra.mxu0 0.0
    %396 = vmatprep.subr.mxu0 0.0
    %397 = vmatpush1.msra.mxu0 0.0
    %398 = vmatprep.subr.mxu0 0.0
    %399 = vmatpush1.msra.mxu0 0.0
    %400 = vmatprep.subr.mxu0 0.0
    %401 = vmatpush1.msra.mxu0 0.0
    %402 = vmatprep.subr.mxu0 0.0
    %403 = vmatpush1.msra.mxu0 0.0
    %404 = vmatprep.subr.mxu0 0.0
    %405 = vmatpush1.msra.mxu0 0.0
    %406 = vmatprep.subr.mxu0 0.0
    %407 = vmatpush1.msra.mxu0 0.0
    %408 = vmatprep.subr.mxu0 0.0
    %409 = vmatpush1.msra.mxu0 0.0
    %410 = vmatprep.subr.mxu0 0.0
    %411 = vmatpush1.msra.mxu0 0.0
    %412 = vmatprep.subr.mxu0 0.0
    %413 = vmatpush1.msra.mxu0 0.0
    %414 = vmatprep.subr.mxu0 0.0
    %415 = vmatpush1.msra.mxu0 0.0
    %416 = vmatprep.subr.mxu0 0.0
    %417 = vmatpush1.msra.mxu0 0.0
    %418 = vmatprep.mubr.f32.mxu0 0.0
    %419 = vmatmul.mubr.f32.gmra.mrb[0].mxu0 %v331
    %v420 = vpop.f32.mrb[0].mxu0
    %v421 = vadd.f32 %v328, %v420
    %v422 = vpop.f32.mrb[0].mxu0
    %423 = vmatprep.mubr.f32.mxu0 0.0
    %424 = vmatmul.mubr.f32.gmra.mrb[0].mxu0 %v334
    %v425 = vpop.f32.mrb[0].mxu0
    %v426 = vadd.f32 %v328, %v425
    %v427 = vpop.f32.mrb[0].mxu0
    %428 = vmatprep.mubr.f32.mxu0 0.0
    %429 = vmatmul.mubr.f32.gmra.mrb[0].mxu0 %v337
    %v430 = vpop.f32.mrb[0].mxu0
    %v431 = vadd.f32 %v328, %v430
    %v432 = vpop.f32.mrb[0].mxu0
    %433 = vmatprep.mubr.f32.mxu0 0.0
    %434 = vmatmul.mubr.f32.gmra.mrb[0].mxu0 %v340
    %v435 = vpop.f32.mrb[0].mxu0
    %v436 = vadd.f32 %v328, %v435
    %v437 = vpop.f32.mrb[0].mxu0
    %438 = vmatprep.mubr.f32.mxu0 0.0
    %439 = vmatmul.mubr.f32.gmra.mrb[0].mxu0 %v343
    %v440 = vpop.f32.mrb[0].mxu0
    %v441 = vadd.f32 %v328, %v440
    %v442 = vpop.f32.mrb[0].mxu0
    %443 = vmatprep.mubr.f32.mxu0 0.0
    %444 = vmatmul.mubr.f32.gmra.mrb[0].mxu0 %v346
    %v445 = vpop.f32.mrb[0].mxu0
    %v446 = vadd.f32 %v328, %v445
    %v447 = vpop.f32.mrb[0].mxu0
    %448 = vmatprep.mubr.f32.mxu0 0.0
    %449 = vmatmul.mubr.f32.gmra.mrb[0].mxu0 %v349
    %v450 = vpop.f32.mrb[0].mxu0
    %v451 = vadd.f32 %v328, %v450
    %v452 = vpop.f32.mrb[0].mxu0
    %453 = vmatprep.mubr.f32.mxu0 0.0
    %454 = vmatmul.mubr.f32.gmra.mrb[0].mxu0 %v352
    %v455 = vpop.f32.mrb[0].mxu0
    %v456 = vadd.f32 %v328, %v455
    %v457 = vpop.f32.mrb[0].mxu0
    %458 = vdwg.mxu0
    %v459 = vld [vmem:[%s1 + $0x50] sm:$0xff]
    %v460 = vld [vmem:[%s1 + $0x58] sm:$0xff]
    %v461 = vld [vmem:[%s1 + $0x60] sm:$0xff]
    %v462 = vld [vmem:[%s1 + $0x68] sm:$0xff]
    %v463 = vld [vmem:[%s2 + $0x3] sm:$0x1]
    %v465 = vlaneseq
    %v466 = vshrl.u32 %v465, 7
    %v467 = vsub.s32 0, %v466
    %v468 = vrot.slane %v463, %v467
    %v471 = vsel %vm181, 0.0, 0
    %473 = vmatprep.subr.mxu0 0.0
    %474 = vmatpush1.msra.mxu0 %v459
    %475 = vmatprep.subr.mxu0 0.0
    %476 = vmatpush1.msra.mxu0 %v460
    %477 = vmatprep.subr.mxu0 0.0
    %478 = vmatpush1.msra.mxu0 %v461
    %479 = vmatprep.subr.mxu0 0.0
    %480 = vmatpush1.msra.mxu0 %v462
    %481 = vmatprep.subr.mxu0 0.0
    %482 = vmatpush1.msra.mxu0 0.0
    %483 = vmatprep.subr.mxu0 0.0
    %484 = vmatpush1.msra.mxu0 0.0
    %485 = vmatprep.subr.mxu0 0.0
    %486 = vmatpush1.msra.mxu0 0.0
    %487 = vmatprep.subr.mxu0 0.0
    %488 = vmatpush1.msra.mxu0 0.0
    %489 = vmatprep.subr.mxu0 0.0
    %490 = vmatpush1.msra.mxu0 0.0
    %491 = vmatprep.subr.mxu0 0.0
    %492 = vmatpush1.msra.mxu0 0.0
    %493 = vmatprep.subr.mxu0 0.0
    %494 = vmatpush1.msra.mxu0 0.0
    %495 = vmatprep.subr.mxu0 0.0
    %496 = vmatpush1.msra.mxu0 0.0
    %497 = vmatprep.subr.mxu0 0.0
    %498 = vmatpush1.msra.mxu0 0.0
    %499 = vmatprep.subr.mxu0 0.0
    %500 = vmatpush1.msra.mxu0 0.0
    %501 = vmatprep.subr.mxu0 0.0
    %502 = vmatpush1.msra.mxu0 0.0
    %503 = vmatprep.subr.mxu0 0.0
    %504 = vmatpush1.msra.mxu0 0.0
    %505 = vmatprep.subr.mxu0 0.0
    %506 = vmatpush1.msra.mxu0 0.0
    %507 = vmatprep.subr.mxu0 0.0
    %508 = vmatpush1.msra.mxu0 0.0
    %509 = vmatprep.subr.mxu0 0.0
    %510 = vmatpush1.msra.mxu0 0.0
    %511 = vmatprep.subr.mxu0 0.0
    %512 = vmatpush1.msra.mxu0 0.0
    %513 = vmatprep.subr.mxu0 0.0
    %514 = vmatpush1.msra.mxu0 0.0
    %515 = vmatprep.subr.mxu0 0.0
    %516 = vmatpush1.msra.mxu0 0.0
    %517 = vmatprep.subr.mxu0 0.0
    %518 = vmatpush1.msra.mxu0 0.0
    %519 = vmatprep.subr.mxu0 0.0
    %520 = vmatpush1.msra.mxu0 0.0
    %521 = vmatprep.subr.mxu0 0.0
    %522 = vmatpush1.msra.mxu0 0.0
    %523 = vmatprep.subr.mxu0 0.0
    %524 = vmatpush1.msra.mxu0 0.0
    %525 = vmatprep.subr.mxu0 0.0
    %526 = vmatpush1.msra.mxu0 0.0
    %527 = vmatprep.subr.mxu0 0.0
    %528 = vmatpush1.msra.mxu0 0.0
    %529 = vmatprep.subr.mxu0 0.0
    %530 = vmatpush1.msra.mxu0 0.0
    %531 = vmatprep.subr.mxu0 0.0
    %532 = vmatpush1.msra.mxu0 0.0
    %533 = vmatprep.subr.mxu0 0.0
    %534 = vmatpush1.msra.mxu0 0.0
    %535 = vmatprep.subr.mxu0 0.0
    %536 = vmatpush1.msra.mxu0 0.0
    %537 = vmatprep.mubr.f32.mxu0 0.0
    %538 = vmatmul.mubr.f32.gmra.mrb[0].mxu0 %v471
    %v539 = vpop.f32.mrb[0].mxu0
    %v540 = vadd.f32 %v468, %v539
    %v541 = vpop.f32.mrb[0].mxu0
    %542 = vdwg.mxu0
    %v543 = vadd.f32 %v421, %v540
    %v544 = vxor.u32 %v543, 2147483648
    %v545 = vmul.f32 %v544, 1.442695
    %v546 = vpow.pop %v545
    %v547 = vadd.f32 %v546, 1.0
    %v548 = vrcp.pop %v547
    %v549 = vmul.f32 1.0, %v548
    %551 = vrot.lane.b32.xlu0 %v540, 64
    %v552 = vpop.permute.xlu0 %551
    %v554 = vmul.f32 %v549, %v552
    %556 = vrot.lane.b32.xlu0 %v554, 64
    %v557 = vpop.permute.xlu0 %556
    %v559 = vadd.f32 %v421, %v557
    %v560 = vtanh.pop %v559
    %v561 = vsub.f32 1.0, %v549
    %563 = vrot.lane.b32.xlu0 %v560, 96
    %v564 = vpop.permute.xlu0 %563
    %v566 = vmul.f32 %v561, %v564
    %v567 = vmul.f32 %v549, 0.0
    %v568 = vadd.f32 %v566, %v567
    %570 = vrot.lane.b32.xlu0 %v568, 96
    %v571 = vpop.permute.xlu0 %570
    %573 = vst.msk [vmem:[#allocation2] sm:$0xff] %vm181, %v571
    %v574 = vsel %vm181, %v571, 0
    %576 = vmatprep.subr.mxu0 0.0
    %577 = vmatpush1.msra.mxu0 %v459
    %578 = vmatprep.subr.mxu0 0.0
    %579 = vmatpush1.msra.mxu0 %v460
    %580 = vmatprep.subr.mxu0 0.0
    %581 = vmatpush1.msra.mxu0 %v461
    %582 = vmatprep.subr.mxu0 0.0
    %583 = vmatpush1.msra.mxu0 %v462
    %584 = vmatprep.subr.mxu0 0.0
    %585 = vmatpush1.msra.mxu0 0.0
    %586 = vmatprep.subr.mxu0 0.0
    %587 = vmatpush1.msra.mxu0 0.0
    %588 = vmatprep.subr.mxu0 0.0
    %589 = vmatpush1.msra.mxu0 0.0
    %590 = vmatprep.subr.mxu0 0.0
    %591 = vmatpush1.msra.mxu0 0.0
    %592 = vmatprep.subr.mxu0 0.0
    %593 = vmatpush1.msra.mxu0 0.0
    %594 = vmatprep.subr.mxu0 0.0
    %595 = vmatpush1.msra.mxu0 0.0
    %596 = vmatprep.subr.mxu0 0.0
    %597 = vmatpush1.msra.mxu0 0.0
    %598 = vmatprep.subr.mxu0 0.0
    %599 = vmatpush1.msra.mxu0 0.0
    %600 = vmatprep.subr.mxu0 0.0
    %601 = vmatpush1.msra.mxu0 0.0
    %602 = vmatprep.subr.mxu0 0.0
    %603 = vmatpush1.msra.mxu0 0.0
    %604 = vmatprep.subr.mxu0 0.0
    %605 = vmatpush1.msra.mxu0 0.0
    %606 = vmatprep.subr.mxu0 0.0
    %607 = vmatpush1.msra.mxu0 0.0
    %608 = vmatprep.subr.mxu0 0.0
    %609 = vmatpush1.msra.mxu0 0.0
    %610 = vmatprep.subr.mxu0 0.0
    %611 = vmatpush1.msra.mxu0 0.0
    %612 = vmatprep.subr.mxu0 0.0
    %613 = vmatpush1.msra.mxu0 0.0
    %614 = vmatprep.subr.mxu0 0.0
    %615 = vmatpush1.msra.mxu0 0.0
    %616 = vmatprep.subr.mxu0 0.0
    %617 = vmatpush1.msra.mxu0 0.0
    %618 = vmatprep.subr.mxu0 0.0
    %619 = vmatpush1.msra.mxu0 0.0
    %620 = vmatprep.subr.mxu0 0.0
    %621 = vmatpush1.msra.mxu0 0.0
    %622 = vmatprep.subr.mxu0 0.0
    %623 = vmatpush1.msra.mxu0 0.0
    %624 = vmatprep.subr.mxu0 0.0
    %625 = vmatpush1.msra.mxu0 0.0
    %626 = vmatprep.subr.mxu0 0.0
    %627 = vmatpush1.msra.mxu0 0.0
    %628 = vmatprep.subr.mxu0 0.0
    %629 = vmatpush1.msra.mxu0 0.0
    %630 = vmatprep.subr.mxu0 0.0
    %631 = vmatpush1.msra.mxu0 0.0
    %632 = vmatprep.subr.mxu0 0.0
    %633 = vmatpush1.msra.mxu0 0.0
    %634 = vmatprep.subr.mxu0 0.0
    %635 = vmatpush1.msra.mxu0 0.0
    %636 = vmatprep.subr.mxu0 0.0
    %637 = vmatpush1.msra.mxu0 0.0
    %638 = vmatprep.subr.mxu0 0.0
    %639 = vmatpush1.msra.mxu0 0.0
    %640 = vmatprep.mubr.f32.mxu0 0.0
    %641 = vmatmul.mubr.f32.gmra.mrb[0].mxu0 %v574
    %v642 = vpop.f32.mrb[0].mxu0
    %v643 = vadd.f32 %v468, %v642
    %v644 = vpop.f32.mrb[0].mxu0
    %645 = vdwg.mxu0
    %v646 = vadd.f32 %v426, %v643
    %v647 = vxor.u32 %v646, 2147483648
    %v648 = vmul.f32 %v647, 1.442695
    %v649 = vpow.pop %v648
    %v650 = vadd.f32 %v649, 1.0
    %v651 = vrcp.pop %v650
    %v652 = vmul.f32 1.0, %v651
    %654 = vrot.lane.b32.xlu0 %v643, 64
    %v655 = vpop.permute.xlu0 %654
    %v657 = vmul.f32 %v652, %v655
    %659 = vrot.lane.b32.xlu0 %v657, 64
    %v660 = vpop.permute.xlu0 %659
    %v662 = vadd.f32 %v426, %v660
    %v663 = vtanh.pop %v662
    %v664 = vsub.f32 1.0, %v652
    %666 = vrot.lane.b32.xlu0 %v663, 96
    %v667 = vpop.permute.xlu0 %666
    %v669 = vmul.f32 %v664, %v667
    %v670 = vmul.f32 %v652, %v568
    %v671 = vadd.f32 %v669, %v670
    %673 = vrot.lane.b32.xlu0 %v671, 96
    %v674 = vpop.permute.xlu0 %673
    %676 = vst.msk [vmem:[#allocation2 + $0x8] sm:$0xff] %vm181, %v674
    %v677 = vsel %vm181, %v674, 0
    %679 = vmatprep.subr.mxu0 0.0
    %680 = vmatpush1.msra.mxu0 %v459
    %681 = vmatprep.subr.mxu0 0.0
    %682 = vmatpush1.msra.mxu0 %v460
    %683 = vmatprep.subr.mxu0 0.0
    %684 = vmatpush1.msra.mxu0 %v461
    %685 = vmatprep.subr.mxu0 0.0
    %686 = vmatpush1.msra.mxu0 %v462
    %687 = vmatprep.subr.mxu0 0.0
    %688 = vmatpush1.msra.mxu0 0.0
    %689 = vmatprep.subr.mxu0 0.0
    %690 = vmatpush1.msra.mxu0 0.0
    %691 = vmatprep.subr.mxu0 0.0
    %692 = vmatpush1.msra.mxu0 0.0
    %693 = vmatprep.subr.mxu0 0.0
    %694 = vmatpush1.msra.mxu0 0.0
    %695 = vmatprep.subr.mxu0 0.0
    %696 = vmatpush1.msra.mxu0 0.0
    %697 = vmatprep.subr.mxu0 0.0
    %698 = vmatpush1.msra.mxu0 0.0
    %699 = vmatprep.subr.mxu0 0.0
    %700 = vmatpush1.msra.mxu0 0.0
    %701 = vmatprep.subr.mxu0 0.0
    %702 = vmatpush1.msra.mxu0 0.0
    %703 = vmatprep.subr.mxu0 0.0
    %704 = vmatpush1.msra.mxu0 0.0
    %705 = vmatprep.subr.mxu0 0.0
    %706 = vmatpush1.msra.mxu0 0.0
    %707 = vmatprep.subr.mxu0 0.0
    %708 = vmatpush1.msra.mxu0 0.0
    %709 = vmatprep.subr.mxu0 0.0
    %710 = vmatpush1.msra.mxu0 0.0
    %711 = vmatprep.subr.mxu0 0.0
    %712 = vmatpush1.msra.mxu0 0.0
    %713 = vmatprep.subr.mxu0 0.0
    %714 = vmatpush1.msra.mxu0 0.0
    %715 = vmatprep.subr.mxu0 0.0
    %716 = vmatpush1.msra.mxu0 0.0
    %717 = vmatprep.subr.mxu0 0.0
    %718 = vmatpush1.msra.mxu0 0.0
    %719 = vmatprep.subr.mxu0 0.0
    %720 = vmatpush1.msra.mxu0 0.0
    %721 = vmatprep.subr.mxu0 0.0
    %722 = vmatpush1.msra.mxu0 0.0
    %723 = vmatprep.subr.mxu0 0.0
    %724 = vmatpush1.msra.mxu0 0.0
    %725 = vmatprep.subr.mxu0 0.0
    %726 = vmatpush1.msra.mxu0 0.0
    %727 = vmatprep.subr.mxu0 0.0
    %728 = vmatpush1.msra.mxu0 0.0
    %729 = vmatprep.subr.mxu0 0.0
    %730 = vmatpush1.msra.mxu0 0.0
    %731 = vmatprep.subr.mxu0 0.0
    %732 = vmatpush1.msra.mxu0 0.0
    %733 = vmatprep.subr.mxu0 0.0
    %734 = vmatpush1.msra.mxu0 0.0
    %735 = vmatprep.subr.mxu0 0.0
    %736 = vmatpush1.msra.mxu0 0.0
    %737 = vmatprep.subr.mxu0 0.0
    %738 = vmatpush1.msra.mxu0 0.0
    %739 = vmatprep.subr.mxu0 0.0
    %740 = vmatpush1.msra.mxu0 0.0
    %741 = vmatprep.subr.mxu0 0.0
    %742 = vmatpush1.msra.mxu0 0.0
    %743 = vmatprep.mubr.f32.mxu0 0.0
    %744 = vmatmul.mubr.f32.gmra.mrb[0].mxu0 %v677
    %v745 = vpop.f32.mrb[0].mxu0
    %v746 = vadd.f32 %v468, %v745
    %v747 = vpop.f32.mrb[0].mxu0
    %748 = vdwg.mxu0
    %v749 = vadd.f32 %v431, %v746
    %v750 = vxor.u32 %v749, 2147483648
    %v751 = vmul.f32 %v750, 1.442695
    %v752 = vpow.pop %v751
    %v753 = vadd.f32 %v752, 1.0
    %v754 = vrcp.pop %v753
    %v755 = vmul.f32 1.0, %v754
    %757 = vrot.lane.b32.xlu0 %v746, 64
    %v758 = vpop.permute.xlu0 %757
    %v760 = vmul.f32 %v755, %v758
    %762 = vrot.lane.b32.xlu0 %v760, 64
    %v763 = vpop.permute.xlu0 %762
    %v765 = vadd.f32 %v431, %v763
    %v766 = vtanh.pop %v765
    %v767 = vsub.f32 1.0, %v755
    %769 = vrot.lane.b32.xlu0 %v766, 96
    %v770 = vpop.permute.xlu0 %769
    %v772 = vmul.f32 %v767, %v770
    %v773 = vmul.f32 %v755, %v671
    %v774 = vadd.f32 %v772, %v773
    %776 = vrot.lane.b32.xlu0 %v774, 96
    %v777 = vpop.permute.xlu0 %776
    %779 = vst.msk [vmem:[#allocation2 + $0x10] sm:$0xff] %vm181, %v777
    %v780 = vsel %vm181, %v777, 0
    %782 = vmatprep.subr.mxu0 0.0
    %783 = vmatpush1.msra.mxu0 %v459
    %784 = vmatprep.subr.mxu0 0.0
    %785 = vmatpush1.msra.mxu0 %v460
    %786 = vmatprep.subr.mxu0 0.0
    %787 = vmatpush1.msra.mxu0 %v461
    %788 = vmatprep.subr.mxu0 0.0
    %789 = vmatpush1.msra.mxu0 %v462
    %790 = vmatprep.subr.mxu0 0.0
    %791 = vmatpush1.msra.mxu0 0.0
    %792 = vmatprep.subr.mxu0 0.0
    %793 = vmatpush1.msra.mxu0 0.0
    %794 = vmatprep.subr.mxu0 0.0
    %795 = vmatpush1.msra.mxu0 0.0
    %796 = vmatprep.subr.mxu0 0.0
    %797 = vmatpush1.msra.mxu0 0.0
    %798 = vmatprep.subr.mxu0 0.0
    %799 = vmatpush1.msra.mxu0 0.0
    %800 = vmatprep.subr.mxu0 0.0
    %801 = vmatpush1.msra.mxu0 0.0
    %802 = vmatprep.subr.mxu0 0.0
    %803 = vmatpush1.msra.mxu0 0.0
    %804 = vmatprep.subr.mxu0 0.0
    %805 = vmatpush1.msra.mxu0 0.0
    %806 = vmatprep.subr.mxu0 0.0
    %807 = vmatpush1.msra.mxu0 0.0
    %808 = vmatprep.subr.mxu0 0.0
    %809 = vmatpush1.msra.mxu0 0.0
    %810 = vmatprep.subr.mxu0 0.0
    %811 = vmatpush1.msra.mxu0 0.0
    %812 = vmatprep.subr.mxu0 0.0
    %813 = vmatpush1.msra.mxu0 0.0
    %814 = vmatprep.subr.mxu0 0.0
    %815 = vmatpush1.msra.mxu0 0.0
    %816 = vmatprep.subr.mxu0 0.0
    %817 = vmatpush1.msra.mxu0 0.0
    %818 = vmatprep.subr.mxu0 0.0
    %819 = vmatpush1.msra.mxu0 0.0
    %820 = vmatprep.subr.mxu0 0.0
    %821 = vmatpush1.msra.mxu0 0.0
    %822 = vmatprep.subr.mxu0 0.0
    %823 = vmatpush1.msra.mxu0 0.0
    %824 = vmatprep.subr.mxu0 0.0
    %825 = vmatpush1.msra.mxu0 0.0
    %826 = vmatprep.subr.mxu0 0.0
    %827 = vmatpush1.msra.mxu0 0.0
    %828 = vmatprep.subr.mxu0 0.0
    %829 = vmatpush1.msra.mxu0 0.0
    %830 = vmatprep.subr.mxu0 0.0
    %831 = vmatpush1.msra.mxu0 0.0
    %832 = vmatprep.subr.mxu0 0.0
    %833 = vmatpush1.msra.mxu0 0.0
    %834 = vmatprep.subr.mxu0 0.0
    %835 = vmatpush1.msra.mxu0 0.0
    %836 = vmatprep.subr.mxu0 0.0
    %837 = vmatpush1.msra.mxu0 0.0
    %838 = vmatprep.subr.mxu0 0.0
    %839 = vmatpush1.msra.mxu0 0.0
    %840 = vmatprep.subr.mxu0 0.0
    %841 = vmatpush1.msra.mxu0 0.0
    %842 = vmatprep.subr.mxu0 0.0
    %843 = vmatpush1.msra.mxu0 0.0
    %844 = vmatprep.subr.mxu0 0.0
    %845 = vmatpush1.msra.mxu0 0.0
    %846 = vmatprep.mubr.f32.mxu0 0.0
    %847 = vmatmul.mubr.f32.gmra.mrb[0].mxu0 %v780
    %v848 = vpop.f32.mrb[0].mxu0
    %v849 = vadd.f32 %v468, %v848
    %v850 = vpop.f32.mrb[0].mxu0
    %851 = vdwg.mxu0
    %v852 = vadd.f32 %v436, %v849
    %v853 = vxor.u32 %v852, 2147483648
    %v854 = vmul.f32 %v853, 1.442695
    %v855 = vpow.pop %v854
    %v856 = vadd.f32 %v855, 1.0
    %v857 = vrcp.pop %v856
    %v858 = vmul.f32 1.0, %v857
    %860 = vrot.lane.b32.xlu0 %v849, 64
    %v861 = vpop.permute.xlu0 %860
    %v863 = vmul.f32 %v858, %v861
    %865 = vrot.lane.b32.xlu0 %v863, 64
    %v866 = vpop.permute.xlu0 %865
    %v868 = vadd.f32 %v436, %v866
    %v869 = vtanh.pop %v868
    %v870 = vsub.f32 1.0, %v858
    %872 = vrot.lane.b32.xlu0 %v869, 96
    %v873 = vpop.permute.xlu0 %872
    %v875 = vmul.f32 %v870, %v873
    %v876 = vmul.f32 %v858, %v774
    %v877 = vadd.f32 %v875, %v876
    %879 = vrot.lane.b32.xlu0 %v877, 96
    %v880 = vpop.permute.xlu0 %879
    %882 = vst.msk [vmem:[#allocation2 + $0x18] sm:$0xff] %vm181, %v880
    %v883 = vsel %vm181, %v880, 0
    %885 = vmatprep.subr.mxu0 0.0
    %886 = vmatpush1.msra.mxu0 %v459
    %887 = vmatprep.subr.mxu0 0.0
    %888 = vmatpush1.msra.mxu0 %v460
    %889 = vmatprep.subr.mxu0 0.0
    %890 = vmatpush1.msra.mxu0 %v461
    %891 = vmatprep.subr.mxu0 0.0
    %892 = vmatpush1.msra.mxu0 %v462
    %893 = vmatprep.subr.mxu0 0.0
    %894 = vmatpush1.msra.mxu0 0.0
    %895 = vmatprep.subr.mxu0 0.0
    %896 = vmatpush1.msra.mxu0 0.0
    %897 = vmatprep.subr.mxu0 0.0
    %898 = vmatpush1.msra.mxu0 0.0
    %899 = vmatprep.subr.mxu0 0.0
    %900 = vmatpush1.msra.mxu0 0.0
    %901 = vmatprep.subr.mxu0 0.0
    %902 = vmatpush1.msra.mxu0 0.0
    %903 = vmatprep.subr.mxu0 0.0
    %904 = vmatpush1.msra.mxu0 0.0
    %905 = vmatprep.subr.mxu0 0.0
    %906 = vmatpush1.msra.mxu0 0.0
    %907 = vmatprep.subr.mxu0 0.0
    %908 = vmatpush1.msra.mxu0 0.0
    %909 = vmatprep.subr.mxu0 0.0
    %910 = vmatpush1.msra.mxu0 0.0
    %911 = vmatprep.subr.mxu0 0.0
    %912 = vmatpush1.msra.mxu0 0.0
    %913 = vmatprep.subr.mxu0 0.0
    %914 = vmatpush1.msra.mxu0 0.0
    %915 = vmatprep.subr.mxu0 0.0
    %916 = vmatpush1.msra.mxu0 0.0
    %917 = vmatprep.subr.mxu0 0.0
    %918 = vmatpush1.msra.mxu0 0.0
    %919 = vmatprep.subr.mxu0 0.0
    %920 = vmatpush1.msra.mxu0 0.0
    %921 = vmatprep.subr.mxu0 0.0
    %922 = vmatpush1.msra.mxu0 0.0
    %923 = vmatprep.subr.mxu0 0.0
    %924 = vmatpush1.msra.mxu0 0.0
    %925 = vmatprep.subr.mxu0 0.0
    %926 = vmatpush1.msra.mxu0 0.0
    %927 = vmatprep.subr.mxu0 0.0
    %928 = vmatpush1.msra.mxu0 0.0
    %929 = vmatprep.subr.mxu0 0.0
    %930 = vmatpush1.msra.mxu0 0.0
    %931 = vmatprep.subr.mxu0 0.0
    %932 = vmatpush1.msra.mxu0 0.0
    %933 = vmatprep.subr.mxu0 0.0
    %934 = vmatpush1.msra.mxu0 0.0
    %935 = vmatprep.subr.mxu0 0.0
    %936 = vmatpush1.msra.mxu0 0.0
    %937 = vmatprep.subr.mxu0 0.0
    %938 = vmatpush1.msra.mxu0 0.0
    %939 = vmatprep.subr.mxu0 0.0
    %940 = vmatpush1.msra.mxu0 0.0
    %941 = vmatprep.subr.mxu0 0.0
    %942 = vmatpush1.msra.mxu0 0.0
    %943 = vmatprep.subr.mxu0 0.0
    %944 = vmatpush1.msra.mxu0 0.0
    %945 = vmatprep.subr.mxu0 0.0
    %946 = vmatpush1.msra.mxu0 0.0
    %947 = vmatprep.subr.mxu0 0.0
    %948 = vmatpush1.msra.mxu0 0.0
    %949 = vmatprep.mubr.f32.mxu0 0.0
    %950 = vmatmul.mubr.f32.gmra.mrb[0].mxu0 %v883
    %v951 = vpop.f32.mrb[0].mxu0
    %v952 = vadd.f32 %v468, %v951
    %v953 = vpop.f32.mrb[0].mxu0
    %954 = vdwg.mxu0
    %v955 = vadd.f32 %v441, %v952
    %v956 = vxor.u32 %v955, 2147483648
    %v957 = vmul.f32 %v956, 1.442695
    %v958 = vpow.pop %v957
    %v959 = vadd.f32 %v958, 1.0
    %v960 = vrcp.pop %v959
    %v961 = vmul.f32 1.0, %v960
    %963 = vrot.lane.b32.xlu0 %v952, 64
    %v964 = vpop.permute.xlu0 %963
    %v966 = vmul.f32 %v961, %v964
    %968 = vrot.lane.b32.xlu0 %v966, 64
    %v969 = vpop.permute.xlu0 %968
    %v971 = vadd.f32 %v441, %v969
    %v972 = vtanh.pop %v971
    %v973 = vsub.f32 1.0, %v961
    %975 = vrot.lane.b32.xlu0 %v972, 96
    %v976 = vpop.permute.xlu0 %975
    %v978 = vmul.f32 %v973, %v976
    %v979 = vmul.f32 %v961, %v877
    %v980 = vadd.f32 %v978, %v979
    %982 = vrot.lane.b32.xlu0 %v980, 96
    %v983 = vpop.permute.xlu0 %982
    %985 = vst.msk [vmem:[#allocation2 + $0x20] sm:$0xff] %vm181, %v983
    %v986 = vsel %vm181, %v983, 0
    %988 = vmatprep.subr.mxu0 0.0
    %989 = vmatpush1.msra.mxu0 %v459
    %990 = vmatprep.subr.mxu0 0.0
    %991 = vmatpush1.msra.mxu0 %v460
    %992 = vmatprep.subr.mxu0 0.0
    %993 = vmatpush1.msra.mxu0 %v461
    %994 = vmatprep.subr.mxu0 0.0
    %995 = vmatpush1.msra.mxu0 %v462
    %996 = vmatprep.subr.mxu0 0.0
    %997 = vmatpush1.msra.mxu0 0.0
    %998 = vmatprep.subr.mxu0 0.0
    %999 = vmatpush1.msra.mxu0 0.0
    %1000 = vmatprep.subr.mxu0 0.0
    %1001 = vmatpush1.msra.mxu0 0.0
    %1002 = vmatprep.subr.mxu0 0.0
    %1003 = vmatpush1.msra.mxu0 0.0
    %1004 = vmatprep.subr.mxu0 0.0
    %1005 = vmatpush1.msra.mxu0 0.0
    %1006 = vmatprep.subr.mxu0 0.0
    %1007 = vmatpush1.msra.mxu0 0.0
    %1008 = vmatprep.subr.mxu0 0.0
    %1009 = vmatpush1.msra.mxu0 0.0
    %1010 = vmatprep.subr.mxu0 0.0
    %1011 = vmatpush1.msra.mxu0 0.0
    %1012 = vmatprep.subr.mxu0 0.0
    %1013 = vmatpush1.msra.mxu0 0.0
    %1014 = vmatprep.subr.mxu0 0.0
    %1015 = vmatpush1.msra.mxu0 0.0
    %1016 = vmatprep.subr.mxu0 0.0
    %1017 = vmatpush1.msra.mxu0 0.0
    %1018 = vmatprep.subr.mxu0 0.0
    %1019 = vmatpush1.msra.mxu0 0.0
    %1020 = vmatprep.subr.mxu0 0.0
    %1021 = vmatpush1.msra.mxu0 0.0
    %1022 = vmatprep.subr.mxu0 0.0
    %1023 = vmatpush1.msra.mxu0 0.0
    %1024 = vmatprep.subr.mxu0 0.0
    %1025 = vmatpush1.msra.mxu0 0.0
    %1026 = vmatprep.subr.mxu0 0.0
    %1027 = vmatpush1.msra.mxu0 0.0
    %1028 = vmatprep.subr.mxu0 0.0
    %1029 = vmatpush1.msra.mxu0 0.0
    %1030 = vmatprep.subr.mxu0 0.0
    %1031 = vmatpush1.msra.mxu0 0.0
    %1032 = vmatprep.subr.mxu0 0.0
    %1033 = vmatpush1.msra.mxu0 0.0
    %1034 = vmatprep.subr.mxu0 0.0
    %1035 = vmatpush1.msra.mxu0 0.0
    %1036 = vmatprep.subr.mxu0 0.0
    %1037 = vmatpush1.msra.mxu0 0.0
    %1038 = vmatprep.subr.mxu0 0.0
    %1039 = vmatpush1.msra.mxu0 0.0
    %1040 = vmatprep.subr.mxu0 0.0
    %1041 = vmatpush1.msra.mxu0 0.0
    %1042 = vmatprep.subr.mxu0 0.0
    %1043 = vmatpush1.msra.mxu0 0.0
    %1044 = vmatprep.subr.mxu0 0.0
    %1045 = vmatpush1.msra.mxu0 0.0
    %1046 = vmatprep.subr.mxu0 0.0
    %1047 = vmatpush1.msra.mxu0 0.0
    %1048 = vmatprep.subr.mxu0 0.0
    %1049 = vmatpush1.msra.mxu0 0.0
    %1050 = vmatprep.subr.mxu0 0.0
    %1051 = vmatpush1.msra.mxu0 0.0
    %1052 = vmatprep.mubr.f32.mxu0 0.0
    %1053 = vmatmul.mubr.f32.gmra.mrb[0].mxu0 %v986
    %v1054 = vpop.f32.mrb[0].mxu0
    %v1055 = vadd.f32 %v468, %v1054
    %v1056 = vpop.f32.mrb[0].mxu0
    %1057 = vdwg.mxu0
    %v1058 = vadd.f32 %v446, %v1055
    %v1059 = vxor.u32 %v1058, 2147483648
    %v1060 = vmul.f32 %v1059, 1.442695
    %v1061 = vpow.pop %v1060
    %v1062 = vadd.f32 %v1061, 1.0
    %v1063 = vrcp.pop %v1062
    %v1064 = vmul.f32 1.0, %v1063
    %1066 = vrot.lane.b32.xlu0 %v1055, 64
    %v1067 = vpop.permute.xlu0 %1066
    %v1069 = vmul.f32 %v1064, %v1067
    %1071 = vrot.lane.b32.xlu0 %v1069, 64
    %v1072 = vpop.permute.xlu0 %1071
    %v1074 = vadd.f32 %v446, %v1072
    %v1075 = vtanh.pop %v1074
    %v1076 = vsub.f32 1.0, %v1064
    %1078 = vrot.lane.b32.xlu0 %v1075, 96
    %v1079 = vpop.permute.xlu0 %1078
    %v1081 = vmul.f32 %v1076, %v1079
    %v1082 = vmul.f32 %v1064, %v980
    %v1083 = vadd.f32 %v1081, %v1082
    %1085 = vrot.lane.b32.xlu0 %v1083, 96
    %v1086 = vpop.permute.xlu0 %1085
    %1088 = vst.msk [vmem:[#allocation2 + $0x28] sm:$0xff] %vm181, %v1086
    %v1089 = vsel %vm181, %v1086, 0
    %1091 = vmatprep.subr.mxu0 0.0
    %1092 = vmatpush1.msra.mxu0 %v459
    %1093 = vmatprep.subr.mxu0 0.0
    %1094 = vmatpush1.msra.mxu0 %v460
    %1095 = vmatprep.subr.mxu0 0.0
    %1096 = vmatpush1.msra.mxu0 %v461
    %1097 = vmatprep.subr.mxu0 0.0
    %1098 = vmatpush1.msra.mxu0 %v462
    %1099 = vmatprep.subr.mxu0 0.0
    %1100 = vmatpush1.msra.mxu0 0.0
    %1101 = vmatprep.subr.mxu0 0.0
    %1102 = vmatpush1.msra.mxu0 0.0
    %1103 = vmatprep.subr.mxu0 0.0
    %1104 = vmatpush1.msra.mxu0 0.0
    %1105 = vmatprep.subr.mxu0 0.0
    %1106 = vmatpush1.msra.mxu0 0.0
    %1107 = vmatprep.subr.mxu0 0.0
    %1108 = vmatpush1.msra.mxu0 0.0
    %1109 = vmatprep.subr.mxu0 0.0
    %1110 = vmatpush1.msra.mxu0 0.0
    %1111 = vmatprep.subr.mxu0 0.0
    %1112 = vmatpush1.msra.mxu0 0.0
    %1113 = vmatprep.subr.mxu0 0.0
    %1114 = vmatpush1.msra.mxu0 0.0
    %1115 = vmatprep.subr.mxu0 0.0
    %1116 = vmatpush1.msra.mxu0 0.0
    %1117 = vmatprep.subr.mxu0 0.0
    %1118 = vmatpush1.msra.mxu0 0.0
    %1119 = vmatprep.subr.mxu0 0.0
    %1120 = vmatpush1.msra.mxu0 0.0
    %1121 = vmatprep.subr.mxu0 0.0
    %1122 = vmatpush1.msra.mxu0 0.0
    %1123 = vmatprep.subr.mxu0 0.0
    %1124 = vmatpush1.msra.mxu0 0.0
    %1125 = vmatprep.subr.mxu0 0.0
    %1126 = vmatpush1.msra.mxu0 0.0
    %1127 = vmatprep.subr.mxu0 0.0
    %1128 = vmatpush1.msra.mxu0 0.0
    %1129 = vmatprep.subr.mxu0 0.0
    %1130 = vmatpush1.msra.mxu0 0.0
    %1131 = vmatprep.subr.mxu0 0.0
    %1132 = vmatpush1.msra.mxu0 0.0
    %1133 = vmatprep.subr.mxu0 0.0
    %1134 = vmatpush1.msra.mxu0 0.0
    %1135 = vmatprep.subr.mxu0 0.0
    %1136 = vmatpush1.msra.mxu0 0.0
    %1137 = vmatprep.subr.mxu0 0.0
    %1138 = vmatpush1.msra.mxu0 0.0
    %1139 = vmatprep.subr.mxu0 0.0
    %1140 = vmatpush1.msra.mxu0 0.0
    %1141 = vmatprep.subr.mxu0 0.0
    %1142 = vmatpush1.msra.mxu0 0.0
    %1143 = vmatprep.subr.mxu0 0.0
    %1144 = vmatpush1.msra.mxu0 0.0
    %1145 = vmatprep.subr.mxu0 0.0
    %1146 = vmatpush1.msra.mxu0 0.0
    %1147 = vmatprep.subr.mxu0 0.0
    %1148 = vmatpush1.msra.mxu0 0.0
    %1149 = vmatprep.subr.mxu0 0.0
    %1150 = vmatpush1.msra.mxu0 0.0
    %1151 = vmatprep.subr.mxu0 0.0
    %1152 = vmatpush1.msra.mxu0 0.0
    %1153 = vmatprep.subr.mxu0 0.0
    %1154 = vmatpush1.msra.mxu0 0.0
    %1155 = vmatprep.mubr.f32.mxu0 0.0
    %1156 = vmatmul.mubr.f32.gmra.mrb[0].mxu0 %v1089
    %v1157 = vpop.f32.mrb[0].mxu0
    %v1158 = vadd.f32 %v468, %v1157
    %v1159 = vpop.f32.mrb[0].mxu0
    %1160 = vdwg.mxu0
    %v1161 = vadd.f32 %v451, %v1158
    %v1162 = vxor.u32 %v1161, 2147483648
    %v1163 = vmul.f32 %v1162, 1.442695
    %v1164 = vpow.pop %v1163
    %v1165 = vadd.f32 %v1164, 1.0
    %v1166 = vrcp.pop %v1165
    %v1167 = vmul.f32 1.0, %v1166
    %1169 = vrot.lane.b32.xlu0 %v1158, 64
    %v1170 = vpop.permute.xlu0 %1169
    %v1172 = vmul.f32 %v1167, %v1170
    %1174 = vrot.lane.b32.xlu0 %v1172, 64
    %v1175 = vpop.permute.xlu0 %1174
    %v1177 = vadd.f32 %v451, %v1175
    %v1178 = vtanh.pop %v1177
    %v1179 = vsub.f32 1.0, %v1167
    %1181 = vrot.lane.b32.xlu0 %v1178, 96
    %v1182 = vpop.permute.xlu0 %1181
    %v1184 = vmul.f32 %v1179, %v1182
    %v1185 = vmul.f32 %v1167, %v1083
    %v1186 = vadd.f32 %v1184, %v1185
    %1188 = vrot.lane.b32.xlu0 %v1186, 96
    %v1189 = vpop.permute.xlu0 %1188
    %1191 = vst.msk [vmem:[#allocation2 + $0x30] sm:$0xff] %vm181, %v1189
    %v1192 = vsel %vm181, %v1189, 0
    %1194 = vmatprep.subr.mxu0 0.0
    %1195 = vmatpush1.msra.mxu0 %v459
    %1196 = vmatprep.subr.mxu0 0.0
    %1197 = vmatpush1.msra.mxu0 %v460
    %1198 = vmatprep.subr.mxu0 0.0
    %1199 = vmatpush1.msra.mxu0 %v461
    %1200 = vmatprep.subr.mxu0 0.0
    %1201 = vmatpush1.msra.mxu0 %v462
    %1202 = vmatprep.subr.mxu0 0.0
    %1203 = vmatpush1.msra.mxu0 0.0
    %1204 = vmatprep.subr.mxu0 0.0
    %1205 = vmatpush1.msra.mxu0 0.0
    %1206 = vmatprep.subr.mxu0 0.0
    %1207 = vmatpush1.msra.mxu0 0.0
    %1208 = vmatprep.subr.mxu0 0.0
    %1209 = vmatpush1.msra.mxu0 0.0
    %1210 = vmatprep.subr.mxu0 0.0
    %1211 = vmatpush1.msra.mxu0 0.0
    %1212 = vmatprep.subr.mxu0 0.0
    %1213 = vmatpush1.msra.mxu0 0.0
    %1214 = vmatprep.subr.mxu0 0.0
    %1215 = vmatpush1.msra.mxu0 0.0
    %1216 = vmatprep.subr.mxu0 0.0
    %1217 = vmatpush1.msra.mxu0 0.0
    %1218 = vmatprep.subr.mxu0 0.0
    %1219 = vmatpush1.msra.mxu0 0.0
    %1220 = vmatprep.subr.mxu0 0.0
    %1221 = vmatpush1.msra.mxu0 0.0
    %1222 = vmatprep.subr.mxu0 0.0
    %1223 = vmatpush1.msra.mxu0 0.0
    %1224 = vmatprep.subr.mxu0 0.0
    %1225 = vmatpush1.msra.mxu0 0.0
    %1226 = vmatprep.subr.mxu0 0.0
    %1227 = vmatpush1.msra.mxu0 0.0
    %1228 = vmatprep.subr.mxu0 0.0
    %1229 = vmatpush1.msra.mxu0 0.0
    %1230 = vmatprep.subr.mxu0 0.0
    %1231 = vmatpush1.msra.mxu0 0.0
    %1232 = vmatprep.subr.mxu0 0.0
    %1233 = vmatpush1.msra.mxu0 0.0
    %1234 = vmatprep.subr.mxu0 0.0
    %1235 = vmatpush1.msra.mxu0 0.0
    %1236 = vmatprep.subr.mxu0 0.0
    %1237 = vmatpush1.msra.mxu0 0.0
    %1238 = vmatprep.subr.mxu0 0.0
    %1239 = vmatpush1.msra.mxu0 0.0
    %1240 = vmatprep.subr.mxu0 0.0
    %1241 = vmatpush1.msra.mxu0 0.0
    %1242 = vmatprep.subr.mxu0 0.0
    %1243 = vmatpush1.msra.mxu0 0.0
    %1244 = vmatprep.subr.mxu0 0.0
    %1245 = vmatpush1.msra.mxu0 0.0
    %1246 = vmatprep.subr.mxu0 0.0
    %1247 = vmatpush1.msra.mxu0 0.0
    %1248 = vmatprep.subr.mxu0 0.0
    %1249 = vmatpush1.msra.mxu0 0.0
    %1250 = vmatprep.subr.mxu0 0.0
    %1251 = vmatpush1.msra.mxu0 0.0
    %1252 = vmatprep.subr.mxu0 0.0
    %1253 = vmatpush1.msra.mxu0 0.0
    %1254 = vmatprep.subr.mxu0 0.0
    %1255 = vmatpush1.msra.mxu0 0.0
    %1256 = vmatprep.subr.mxu0 0.0
    %1257 = vmatpush1.msra.mxu0 0.0
    %1258 = vmatprep.mubr.f32.mxu0 0.0
    %1259 = vmatmul.mubr.f32.gmra.mrb[0].mxu0 %v1192
    %v1260 = vpop.f32.mrb[0].mxu0
    %v1261 = vadd.f32 %v468, %v1260
    %v1262 = vpop.f32.mrb[0].mxu0
    %1263 = vdwg.mxu0
    %v1264 = vadd.f32 %v456, %v1261
    %v1265 = vxor.u32 %v1264, 2147483648
    %v1266 = vmul.f32 %v1265, 1.442695
    %v1267 = vpow.pop %v1266
    %v1268 = vadd.f32 %v1267, 1.0
    %v1269 = vrcp.pop %v1268
    %v1270 = vmul.f32 1.0, %v1269
    %1272 = vrot.lane.b32.xlu0 %v1261, 64
    %v1273 = vpop.permute.xlu0 %1272
    %v1275 = vmul.f32 %v1270, %v1273
    %1277 = vrot.lane.b32.xlu0 %v1275, 64
    %v1278 = vpop.permute.xlu0 %1277
    %v1280 = vadd.f32 %v456, %v1278
    %v1281 = vtanh.pop %v1280
    %v1282 = vsub.f32 1.0, %v1270
    %1284 = vrot.lane.b32.xlu0 %v1281, 96
    %v1285 = vpop.permute.xlu0 %1284
    %v1287 = vmul.f32 %v1282, %v1285
    %v1288 = vmul.f32 %v1270, %v1186
    %v1289 = vadd.f32 %v1287, %v1288
    %1291 = vrot.lane.b32.xlu0 %v1289, 96
    %v1292 = vpop.permute.xlu0 %1291
    %1294 = vst.msk [vmem:[#allocation2 + $0x38] sm:$0xff] %vm181, %v1292
    %v1295 = vld [vmem:[%s1 + $0x70] sm:$0xff]
    %v1296 = vld [vmem:[%s1 + $0x78] sm:$0xff]
    %v1297 = vld [vmem:[%s1 + $0x80] sm:$0xff]
    %v1298 = vld [vmem:[%s1 + $0x88] sm:$0xff]
    %v1299 = vld [vmem:[%s2 + $0x4] sm:$0x1]
    %v1300 = vld [vmem:[%s1 + $0x90] sm:$0xff]
    %v1301 = vld [vmem:[%s0] sm:$0xff]
    %v1302 = vld [vmem:[%s0 + $0x8] sm:$0xff]
    %v1303 = vld [vmem:[%s0 + $0x10] sm:$0xff]
    %v1304 = vld [vmem:[%s0 + $0x18] sm:$0xff]
    %v1305 = vld [vmem:[%s0 + $0x20] sm:$0xff]
    %v1306 = vld [vmem:[%s0 + $0x28] sm:$0xff]
    %v1307 = vld [vmem:[%s0 + $0x30] sm:$0xff]
    %v1308 = vld [vmem:[%s0 + $0x38] sm:$0xff]
    %v1309 = vld [vmem:[#allocation2] sm:$0xff]
    %v1310 = vld [vmem:[#allocation2 + $0x8] sm:$0xff]
    %v1311 = vld [vmem:[#allocation2 + $0x10] sm:$0xff]
    %v1312 = vld [vmem:[#allocation2 + $0x18] sm:$0xff]
    %v1313 = vld [vmem:[#allocation2 + $0x20] sm:$0xff]
    %v1314 = vld [vmem:[#allocation2 + $0x28] sm:$0xff]
    %v1315 = vld [vmem:[#allocation2 + $0x30] sm:$0xff]
    %v1316 = vld [vmem:[#allocation2 + $0x38] sm:$0xff]
    %v1318 = vlaneseq
    %v1319 = vshrl.u32 %v1318, 7
    %v1320 = vsub.s32 0, %v1319
    %v1321 = vrot.slane %v1299, %v1320
    %v1324 = vsel %vm181, %v1309, 0
    %v1327 = vsel %vm181, %v1310, 0
    %v1330 = vsel %vm181, %v1311, 0
    %v1333 = vsel %vm181, %v1312, 0
    %v1336 = vsel %vm181, %v1313, 0
    %v1339 = vsel %vm181, %v1314, 0
    %v1342 = vsel %vm181, %v1315, 0
    %v1345 = vsel %vm181, %v1316, 0
    %1347 = vmatprep.subr.mxu0 0.0
    %1348 = vmatpush1.msra.mxu0 %v1295
    %1349 = vmatprep.subr.mxu0 0.0
    %1350 = vmatpush1.msra.mxu0 %v1296
    %1351 = vmatprep.subr.mxu0 0.0
    %1352 = vmatpush1.msra.mxu0 %v1297
    %1353 = vmatprep.subr.mxu0 0.0
    %1354 = vmatpush1.msra.mxu0 %v1298
    %1355 = vmatprep.subr.mxu0 0.0
    %1356 = vmatpush1.msra.mxu0 0.0
    %1357 = vmatprep.subr.mxu0 0.0
    %1358 = vmatpush1.msra.mxu0 0.0
    %1359 = vmatprep.subr.mxu0 0.0
    %1360 = vmatpush1.msra.mxu0 0.0
    %1361 = vmatprep.subr.mxu0 0.0
    %1362 = vmatpush1.msra.mxu0 0.0
    %1363 = vmatprep.subr.mxu0 0.0
    %1364 = vmatpush1.msra.mxu0 0.0
    %1365 = vmatprep.subr.mxu0 0.0
    %1366 = vmatpush1.msra.mxu0 0.0
    %1367 = vmatprep.subr.mxu0 0.0
    %1368 = vmatpush1.msra.mxu0 0.0
    %1369 = vmatprep.subr.mxu0 0.0
    %1370 = vmatpush1.msra.mxu0 0.0
    %1371 = vmatprep.subr.mxu0 0.0
    %1372 = vmatpush1.msra.mxu0 0.0
    %1373 = vmatprep.subr.mxu0 0.0
    %1374 = vmatpush1.msra.mxu0 0.0
    %1375 = vmatprep.subr.mxu0 0.0
    %1376 = vmatpush1.msra.mxu0 0.0
    %1377 = vmatprep.subr.mxu0 0.0
    %1378 = vmatpush1.msra.mxu0 0.0
    %1379 = vmatprep.subr.mxu0 0.0
    %1380 = vmatpush1.msra.mxu0 0.0
    %1381 = vmatprep.subr.mxu0 0.0
    %1382 = vmatpush1.msra.mxu0 0.0
    %1383 = vmatprep.subr.mxu0 0.0
    %1384 = vmatpush1.msra.mxu0 0.0
    %1385 = vmatprep.subr.mxu0 0.0
    %1386 = vmatpush1.msra.mxu0 0.0
    %1387 = vmatprep.subr.mxu0 0.0
    %1388 = vmatpush1.msra.mxu0 0.0
    %1389 = vmatprep.subr.mxu0 0.0
    %1390 = vmatpush1.msra.mxu0 0.0
    %1391 = vmatprep.subr.mxu0 0.0
    %1392 = vmatpush1.msra.mxu0 0.0
    %1393 = vmatprep.subr.mxu0 0.0
    %1394 = vmatpush1.msra.mxu0 0.0
    %1395 = vmatprep.subr.mxu0 0.0
    %1396 = vmatpush1.msra.mxu0 0.0
    %1397 = vmatprep.subr.mxu0 0.0
    %1398 = vmatpush1.msra.mxu0 0.0
    %1399 = vmatprep.subr.mxu0 0.0
    %1400 = vmatpush1.msra.mxu0 0.0
    %1401 = vmatprep.subr.mxu0 0.0
    %1402 = vmatpush1.msra.mxu0 0.0
    %1403 = vmatprep.subr.mxu0 0.0
    %1404 = vmatpush1.msra.mxu0 0.0
    %1405 = vmatprep.subr.mxu0 0.0
    %1406 = vmatpush1.msra.mxu0 0.0
    %1407 = vmatprep.subr.mxu0 0.0
    %1408 = vmatpush1.msra.mxu0 0.0
    %1409 = vmatprep.subr.mxu0 0.0
    %1410 = vmatpush1.msra.mxu0 0.0
    %1411 = vmatprep.mubr.f32.mxu0 0.0
    %1412 = vmatmul.mubr.f32.gmra.mrb[0].mxu0 %v1324
    %v1413 = vpop.f32.mrb[0].mxu0
    %v1414 = vadd.f32 %v1321, %v1413
    %v1415 = vpop.f32.mrb[0].mxu0
    %1416 = vmatprep.mubr.f32.mxu0 0.0
    %1417 = vmatmul.mubr.f32.gmra.mrb[0].mxu0 %v1327
    %v1418 = vpop.f32.mrb[0].mxu0
    %v1419 = vadd.f32 %v1321, %v1418
    %v1420 = vpop.f32.mrb[0].mxu0
    %1421 = vmatprep.mubr.f32.mxu0 0.0
    %1422 = vmatmul.mubr.f32.gmra.mrb[0].mxu0 %v1330
    %v1423 = vpop.f32.mrb[0].mxu0
    %v1424 = vadd.f32 %v1321, %v1423
    %v1425 = vpop.f32.mrb[0].mxu0
    %1426 = vmatprep.mubr.f32.mxu0 0.0
    %1427 = vmatmul.mubr.f32.gmra.mrb[0].mxu0 %v1333
    %v1428 = vpop.f32.mrb[0].mxu0
    %v1429 = vadd.f32 %v1321, %v1428
    %v1430 = vpop.f32.mrb[0].mxu0
    %1431 = vmatprep.mubr.f32.mxu0 0.0
    %1432 = vmatmul.mubr.f32.gmra.mrb[0].mxu0 %v1336
    %v1433 = vpop.f32.mrb[0].mxu0
    %v1434 = vadd.f32 %v1321, %v1433
    %v1435 = vpop.f32.mrb[0].mxu0
    %1436 = vmatprep.mubr.f32.mxu0 0.0
    %1437 = vmatmul.mubr.f32.gmra.mrb[0].mxu0 %v1339
    %v1438 = vpop.f32.mrb[0].mxu0
    %v1439 = vadd.f32 %v1321, %v1438
    %v1440 = vpop.f32.mrb[0].mxu0
    %1441 = vmatprep.mubr.f32.mxu0 0.0
    %1442 = vmatmul.mubr.f32.gmra.mrb[0].mxu0 %v1342
    %v1443 = vpop.f32.mrb[0].mxu0
    %v1444 = vadd.f32 %v1321, %v1443
    %v1445 = vpop.f32.mrb[0].mxu0
    %1446 = vmatprep.mubr.f32.mxu0 0.0
    %1447 = vmatmul.mubr.f32.gmra.mrb[0].mxu0 %v1345
    %v1448 = vpop.f32.mrb[0].mxu0
    %v1449 = vadd.f32 %v1321, %v1448
    %v1450 = vpop.f32.mrb[0].mxu0
    %1451 = vdwg.mxu0
    %1460 = vrot.lane.b32.xlu0 %v1414, 15
    %v1461 = vpop.permute.xlu0 %1460
    %1462 = vrot.lane.b32.xlu0 %v1419, 15
    %v1463 = vpop.permute.xlu0 %1462
    %1464 = vrot.lane.b32.xlu0 %v1424, 15
    %v1465 = vpop.permute.xlu0 %1464
    %1466 = vrot.lane.b32.xlu0 %v1429, 15
    %v1467 = vpop.permute.xlu0 %1466
    %1468 = vrot.lane.b32.xlu0 %v1434, 15
    %v1469 = vpop.permute.xlu0 %1468
    %1470 = vrot.lane.b32.xlu0 %v1439, 15
    %v1471 = vpop.permute.xlu0 %1470
    %1472 = vrot.lane.b32.xlu0 %v1444, 15
    %v1473 = vpop.permute.xlu0 %1472
    %1474 = vrot.lane.b32.xlu0 %v1449, 15
    %v1475 = vpop.permute.xlu0 %1474
    %v1484 = vmul.f32 %v1301, %v1461
    %v1485 = vmul.f32 %v1302, %v1463
    %v1486 = vmul.f32 %v1303, %v1465
    %v1487 = vmul.f32 %v1304, %v1467
    %v1488 = vmul.f32 %v1305, %v1469
    %v1489 = vmul.f32 %v1306, %v1471
    %v1490 = vmul.f32 %v1307, %v1473
    %v1491 = vmul.f32 %v1308, %v1475
    %1500 = vrot.lane.b32.xlu0 %v1484, 112
    %v1501 = vpop.permute.xlu0 %1500
    %1502 = vrot.lane.b32.xlu0 %v1485, 112
    %v1503 = vpop.permute.xlu0 %1502
    %1504 = vrot.lane.b32.xlu0 %v1486, 112
    %v1505 = vpop.permute.xlu0 %1504
    %1506 = vrot.lane.b32.xlu0 %v1487, 112
    %v1507 = vpop.permute.xlu0 %1506
    %1508 = vrot.lane.b32.xlu0 %v1488, 112
    %v1509 = vpop.permute.xlu0 %1508
    %1510 = vrot.lane.b32.xlu0 %v1489, 112
    %v1511 = vpop.permute.xlu0 %1510
    %1512 = vrot.lane.b32.xlu0 %v1490, 112
    %v1513 = vpop.permute.xlu0 %1512
    %1514 = vrot.lane.b32.xlu0 %v1491, 112
    %v1515 = vpop.permute.xlu0 %1514
    %v1524 = vadd.f32 %v1414, %v1501
    %v1525 = vadd.f32 %v1419, %v1503
    %v1526 = vadd.f32 %v1424, %v1505
    %v1527 = vadd.f32 %v1429, %v1507
    %v1528 = vadd.f32 %v1434, %v1509
    %v1529 = vadd.f32 %v1439, %v1511
    %v1530 = vadd.f32 %v1444, %v1513
    %v1531 = vadd.f32 %v1449, %v1515
    %1533 = vset.pattern.permute.xlu0 0
    %1534 = vperm.xlu0 %1533, %v1524
    %v1535 = vpop.permute.xlu0 %1534
    %v1537 = vlaneseq
    %v1538 = vshrl.u32 %v1537, 7
    %v1539 = vsub.s32 0, %v1538
    %v1540 = vrot.slane %v1300, %v1539
    %v1541 = vmul.f32 %v1535, %v1540
    %v1542 = vadd.f32 %v1541, 0.0
    %1544 = vset.pattern.permute.xlu0 0
    %1545 = vperm.xlu0 %1544, %v1525
    %v1546 = vpop.permute.xlu0 %1545
    %v1548 = vlaneseq
    %v1549 = vshrl.u32 %v1548, 7
    %v1550 = vsub.s32 1, %v1549
    %v1551 = vrot.slane %v1300, %v1550
    %v1552 = vmul.f32 %v1546, %v1551
    %v1553 = vadd.f32 %v1542, %v1552
    %1555 = vset.pattern.permute.xlu0 0
    %1556 = vperm.xlu0 %1555, %v1526
    %v1557 = vpop.permute.xlu0 %1556
    %v1559 = vlaneseq
    %v1560 = vshrl.u32 %v1559, 7
    %v1561 = vsub.s32 2, %v1560
    %v1562 = vrot.slane %v1300, %v1561
    %v1563 = vmul.f32 %v1557, %v1562
    %v1564 = vadd.f32 %v1553, %v1563
    %1566 = vset.pattern.permute.xlu0 0
    %1567 = vperm.xlu0 %1566, %v1527
    %v1568 = vpop.permute.xlu0 %1567
    %v1570 = vlaneseq
    %v1571 = vshrl.u32 %v1570, 7
    %v1572 = vsub.s32 3, %v1571
    %v1573 = vrot.slane %v1300, %v1572
    %v1574 = vmul.f32 %v1568, %v1573
    %v1575 = vadd.f32 %v1564, %v1574
    %1577 = vset.pattern.permute.xlu0 0
    %1578 = vperm.xlu0 %1577, %v1528
    %v1579 = vpop.permute.xlu0 %1578
    %v1581 = vlaneseq
    %v1582 = vshrl.u32 %v1581, 7
    %v1583 = vsub.s32 4, %v1582
    %v1584 = vrot.slane %v1300, %v1583
    %v1585 = vmul.f32 %v1579, %v1584
    %v1586 = vadd.f32 %v1575, %v1585
    %1588 = vset.pattern.permute.xlu0 0
    %1589 = vperm.xlu0 %1588, %v1529
    %v1590 = vpop.permute.xlu0 %1589
    %v1592 = vlaneseq
    %v1593 = vshrl.u32 %v1592, 7
    %v1594 = vsub.s32 5, %v1593
    %v1595 = vrot.slane %v1300, %v1594
    %v1596 = vmul.f32 %v1590, %v1595
    %v1597 = vadd.f32 %v1586, %v1596
    %1599 = vset.pattern.permute.xlu0 0
    %1600 = vperm.xlu0 %1599, %v1530
    %v1601 = vpop.permute.xlu0 %1600
    %v1603 = vlaneseq
    %v1604 = vshrl.u32 %v1603, 7
    %v1605 = vsub.s32 6, %v1604
    %v1606 = vrot.slane %v1300, %v1605
    %v1607 = vmul.f32 %v1601, %v1606
    %v1608 = vadd.f32 %v1597, %v1607
    %1610 = vset.pattern.permute.xlu0 0
    %1611 = vperm.xlu0 %1610, %v1531
    %v1612 = vpop.permute.xlu0 %1611
    %v1614 = vlaneseq
    %v1615 = vshrl.u32 %v1614, 7
    %v1616 = vsub.s32 7, %v1615
    %v1617 = vrot.slane %v1300, %v1616
    %v1618 = vmul.f32 %v1612, %v1617
    %v1619 = vadd.f32 %v1608, %v1618
    %vm1620 = vcmask 31744
    %v1621 = vsel %vm1620, %v1619, -inf
    %1622 = vmax.xlane.f32.xlu0 %v1621
    %v1623 = vpop.xlane.xlu0 %1622
    %v1624 = vsub.f32 %v1619, %v1623
    %v1625 = vmul.f32 %v1624, 1.442695
    %v1626 = vpow.pop %v1625
    %v1627 = vsel %vm1620, %v1626, 0.0
    %1628 = vadd.xlane.f32.xlu0 %v1627
    %v1629 = vpop.xlane.xlu0 %1628
    %v1630 = vrcp.pop %v1629
    %v1631 = vmul.f32 %v1626, %v1630
    %vm1632 = vcmask 25600
    %1633 = vst.msk [vmem:[#allocation3] sm:$0x3] %vm1632, %v1631
    // Predicated region
    $region14: #{dgaussian_forward.1} parent=1 // pred_check
      _
    $region15: #{dgaussian_forward.1} parent=1 // pred_check_branch
      %1635 = sbr.rel (0) target = $region17
    $region16: #{dgaussian_forward.1} parent=1 // pred_region
      %s1637 = ssub.s32 32, 32
      %1638 = vsyncadd [#allocation4], %s1637
      %s1640 = sshll.u32 [#allocation3], 4
      %s1641 = int_to_ptr.vmem [resolvable:$true] %s1640
      %1643 = dma.vmem_to_hbm [thread:$0]  %s1641, 32, %s3, [#allocation4]
    $region17: #{dgaussian_forward.1} parent=1 // pred_fallthru
      _
    // Predicated region
    $region18: #{dgaussian_forward.1} parent=1 // pred_check
      _
    $region19: #{dgaussian_forward.1} parent=1 // pred_check_branch
      %1645 = sbr.rel (0) target = $region21
    $region20: #{dgaussian_forward.1} parent=1 // pred_region
      %1646 = dma.done [#allocation4], 32
    $region21: #{dgaussian_forward.1} parent=1 // pred_fallthru
      _
    %1647 = vsyncpa [#allocation4], 1

</llo_original>
